<compile_context>
chip_gen: v7x
topology: tpu7x:2x2x1
jax: 0.10.0
libtpu: 0.0.40
codegen_flags: <defaults>
</compile_context>

<pallas_src>
import jax
import jax.numpy as jnp
from jax import lax
from jax.experimental import pallas as pl
from jax.experimental.pallas import tpu as pltpu

LN_EPS = 1e-5      # nn.LayerNorm default eps
POOL_EPS = 1e-9    # matches the PyTorch forward
NORM_EPS = 1e-12   # F.normalize default eps


def _tower_kernel(ids_ref, table_ref, w_ref, bgb_ref, out_ref):
    """One batch-tile of AveragePoolingTower.

    ids_ref:   (BB, S)      int32     token ids (0 == padding; negative => padding)
    table_ref: (Vp, Ep)     bf16/f32  embedding table (VMEM-resident, zero-padded)
    w_ref:     (Ep, H)      bf16      projection weight (transposed vs torch Linear)
    bgb_ref:   (3, H)       f32       rows: [bias, ln_gamma, ln_beta]
    out_ref:   (BB, H)      f32       L2-normalized tower output
    """
    ids = ids_ref[...]                                       # (BB, S) int32
    BB, S = ids.shape
    V = table_ref.shape[0]
    table = table_ref[...]
    bf16_table = table.dtype == jnp.bfloat16

    # --- token count per row: reduce over S (short axis), exact in f32 -------
    count = jnp.sum((ids > 0).astype(jnp.float32), axis=1, keepdims=True)  # (BB, 1)

    # --- streamed one-hot histogram: only a (BB, V) accumulator stays live ---
    acc_dtype = jnp.bfloat16 if (bf16_table and S <= 256) else jnp.float32
    vocab = lax.broadcasted_iota(jnp.int32, (1, V), 1)        # (1, V)
    hist = jnp.zeros((BB, V), dtype=acc_dtype)
    for s in range(S):                                        # static unrolled loop
        hist = hist + (ids[:, s:s + 1] == vocab).astype(acc_dtype)
    # drop the padding id (row 0 of the table need not be zero)
    hist = jnp.where(vocab > 0, hist, jnp.zeros((), acc_dtype))

    # --- fused gather + masked sum: histogram @ table on the MXU (f32 acc) ---
    if bf16_table and S <= 256:
        sum_emb = jnp.dot(hist, table, preferred_element_type=jnp.float32)
    elif bf16_table:
        # S > 256: exact hi/lo count split keeps the bf16 table un-promoted.
        hist_hi = jnp.floor(hist * (1.0 / 256.0))
        hist_lo = hist - hist_hi * 256.0
        sum_emb = (jnp.dot(hist_lo.astype(jnp.bfloat16), table,
                           preferred_element_type=jnp.float32)
                   + 256.0 * jnp.dot(hist_hi.astype(jnp.bfloat16), table,
                                     preferred_element_type=jnp.float32))
    else:
        # explicit f32-table path (multi-pass MXU; caller's choice of dtype)
        sum_emb = jnp.dot(hist, table, preferred_element_type=jnp.float32)

    inv_cnt = pl.reciprocal(count + POOL_EPS, approx=False)   # EUP
    pooled = sum_emb * inv_cnt                                 # (BB, Ep) f32

    # --- Linear projection + bias (Dropout = identity in eval mode) ----------
    # TODO(synk): Dropout has no effect at inference; stochastic path not implemented.
    proj = jnp.dot(pooled.astype(w_ref.dtype), w_ref[...],
                   preferred_element_type=jnp.float32)         # (BB, H)
    bias = bgb_ref[0:1, :]
    gamma = bgb_ref[1:2, :]
    beta = bgb_ref[2:3, :]
    proj = proj + bias

    # --- LayerNorm over the last dim ------------------------------------------
    mu = jnp.mean(proj, axis=-1, keepdims=True)
    var = jnp.mean((proj - mu) ** 2, axis=-1, keepdims=True)
    ln = (proj - mu) * lax.rsqrt(var + LN_EPS)
    ln = ln * gamma + beta                                     # (BB, H)

    # --- F.normalize(dim=-1): x / max(||x||_2, eps) ---------------------------
    ssq = jnp.sum(ln * ln, axis=-1, keepdims=True)
    inv_nrm = lax.rsqrt(jnp.maximum(ssq, NORM_EPS * NORM_EPS))
    out_ref[...] = ln * inv_nrm


def average_pooling_tower(input_ids, emb_table, w, b, gamma, beta,
                          *, batch_tile=256, vmem_limit_bytes=None):
    """AveragePoolingTower forward.

    input_ids: (B, S) int32 (0 = padding; negative ids are treated as padding,
               unlike torch.nn.Embedding which would raise).
    emb_table: (V, E) bf16 or f32 embedding table.
    w: (E, H) projection weight (transposed vs torch Linear); b/gamma/beta: (H,).
    Returns (B, H) float32, L2-normalized rows.

    The gather is realized as a streamed one-hot-histogram matmul, so V*E must
    fit VMEM alongside W (fine up to a few thousand vocab rows).
    # TODO(synk): for production vocabularies, switch to an HBM row-gather
    # (memory_space=pl.ANY + pltpu.make_async_copy double-buffering) once
    # V*E*itemsize approaches ~half the scoped VMEM budget.
    # TODO(synk): for very long sequences, add a sequence grid axis ("arbitrary")
    # with a VMEM accumulator so the ids block stays small.
    """
    B, S = input_ids.shape
    V, E = emb_table.shape
    E_w, H = w.shape
    assert E_w == E, "w must be (E, H)"

    # --- zero-pad E and V to lane multiples (mathematically identical) -------
    E_pad = -(-E // 128) * 128
    V_pad = -(-V // 128) * 128
    table = emb_table
    if (V_pad != V) or (E_pad != E):
        table = jnp.pad(table, ((0, V_pad - V), (0, E_pad - E)))
    w_bf16 = w.astype(jnp.bfloat16)
    if E_pad != E:
        w_bf16 = jnp.pad(w_bf16, ((0, E_pad - E), (0, 0)))

    # --- pack bias / LN gamma / LN beta into one (3, H) operand --------------
    bgb = jnp.stack([b, gamma, beta], axis=0).astype(jnp.float32)   # (3, H)

    # --- batch tiling: fill MXU M, but keep >= 2 grid steps for v7x megacore --
    batch_tile = min(batch_tile, B)
    if B // batch_tile < 2 and batch_tile > 8 and batch_tile % 2 == 0 \
            and B % (batch_tile // 2) == 0:
        batch_tile //= 2
    assert B % batch_tile == 0, "pad the batch to a multiple of batch_tile"
    grid = (B // batch_tile,)

    # --- explicit VMEM budget (resident table is single-buffered) ------------
    if vmem_limit_bytes is None:
        itemsize_t = table.dtype.itemsize
        resident = (V_pad * E_pad * itemsize_t          # emb table (1 buffer)
                    + E_pad * H * 2                     # W bf16 (1 buffer)
                    + 8 * max(H, 128) * 4)              # padded (3,H) tile
        streamed = 2 * (batch_tile * max(S, 128) * 4    # ids (2 buffers, lane-padded)
                        + batch_tile * H * 4)           # output (2 buffers)
        work = (batch_tile * V_pad * 4 * 2              # hist + one-hot slice
                + batch_tile * E_pad * 4 * 2            # sum_emb + pooled
                + batch_tile * H * 4 * 4)               # proj / ln temporaries
        vmem_limit_bytes = int(min(max(resident + streamed + work + (8 << 20),
                                       32 << 20),
                                   100 << 20))

    return pl.pallas_call(
        _tower_kernel,
        out_shape=jax.ShapeDtypeStruct((B, H), jnp.float32),
        grid_spec=pltpu.PrefetchScalarGridSpec(
            num_scalar_prefetch=0,
            grid=grid,
            in_specs=[
                # streamed per-tile token ids (default double-buffering)
                pl.BlockSpec((batch_tile, S), lambda i: (i, 0)),
                # VMEM-resident constants: single-buffered
                pl.BlockSpec((V_pad, E_pad), lambda i: (0, 0),
                             pipeline_mode=pl.Buffered(1)),
                pl.BlockSpec((E_pad, H), lambda i: (0, 0),
                             pipeline_mode=pl.Buffered(1)),
                pl.BlockSpec((3, H), lambda i: (0, 0),
                             pipeline_mode=pl.Buffered(1)),
            ],
            out_specs=pl.BlockSpec((batch_tile, H), lambda i: (i, 0)),
        ),
        compiler_params=pltpu.CompilerParams(
            dimension_semantics=("parallel",),
            vmem_limit_bytes=vmem_limit_bytes,
        ),
    )(input_ids.astype(jnp.int32), table, w_bf16, bgb)


def _reference(input_ids, emb_table_f32, w, b, gamma, beta):
    mask = (input_ids > 0).astype(jnp.float32)[..., None]
    emb = jnp.take(emb_table_f32, input_ids, axis=0)
    pooled = jnp.sum(emb * mask, axis=1) / (jnp.sum(mask, axis=1) + POOL_EPS)
    proj = pooled @ w + b
    mu = jnp.mean(proj, axis=-1, keepdims=True)
    var = jnp.mean((proj - mu) ** 2, axis=-1, keepdims=True)
    ln = (proj - mu) / jnp.sqrt(var + LN_EPS) * gamma + beta
    nrm = jnp.sqrt(jnp.sum(ln * ln, axis=-1, keepdims=True))
    return ln / jnp.maximum(nrm, NORM_EPS)


if __name__ == "__main__":
    # hidden_dim != embedding_dim -> has_projection branch of the module.
    B, S, V, E, H = 256, 16, 128, 64, 128

    key = jax.random.PRNGKey(0)
    k_ids, k_emb, k_w, k_b = jax.random.split(key, 4)

    # deterministic synthetic parameters (id 0 = padding)
    input_ids = jax.random.randint(k_ids, (B, S), 0, V, dtype=jnp.int32)
    emb_table_f32 = jax.random.normal(k_emb, (V, E), dtype=jnp.float32) * 0.1
    emb_table = emb_table_f32.astype(jnp.bfloat16)         # bf16 big operand
    w = jax.random.normal(k_w, (E, H), dtype=jnp.float32) * 0.05   # Linear weight^T
    b = jax.random.normal(k_b, (H,), dtype=jnp.float32) * 0.01
    gamma = jnp.ones((H,), dtype=jnp.float32)               # LayerNorm init
    beta = jnp.zeros((H,), dtype=jnp.float32)

    # batch_tile=128 with B=256 -> 2 "parallel" grid steps (one per v7x TC).
    out = average_pooling_tower(input_ids, emb_table, w, b, gamma, beta,
                                batch_tile=128)
    out = jax.block_until_ready(out)

    # Reference uses the same bf16-rounded embedding values (upcast to f32) but
    # a full-f32 projection; the kernel runs the projection with bf16 operands
    # (f32 accumulation), so the tolerance is loosened accordingly.
    ref = _reference(input_ids, emb_table.astype(jnp.float32), w, b, gamma, beta)
    assert out.shape == (B, H)
    assert bool(jnp.allclose(out, ref, atol=3e-3, rtol=3e-3)), "mismatch vs reference"

    print("KERNEL_OK")
</pallas_src>

<mosaic_0001>
module attributes {stable_mosaic.version = 11 : i64} {
  func.func @_tower_kernel(%arg0: i32, %arg1: memref<128x16xi32, #tpu.memory_space<vmem>>, %arg2: memref<128x128xbf16, #tpu.memory_space<vmem>>, %arg3: memref<128x128xbf16, #tpu.memory_space<vmem>>, %arg4: memref<3x128xf32, #tpu.memory_space<vmem>>, %arg5: memref<128x128xf32, #tpu.memory_space<vmem>>) attributes {dimension_semantics = [#tpu.dimension_semantics<parallel>], iteration_bounds = array<i64: 2>, scalar_prefetch = 0 : i64, scratch_operands = 0 : i64, tpu.core_type = #tpu.core_type<tc>, window_params = [{transform_indices = @transform_0, window_bounds = array<i64: 128, 16>}, {pipeline_mode = #tpu.pipeline_mode<synchronous>, transform_indices = @transform_1, window_bounds = array<i64: 128, 128>}, {pipeline_mode = #tpu.pipeline_mode<synchronous>, transform_indices = @transform_2, window_bounds = array<i64: 128, 128>}, {pipeline_mode = #tpu.pipeline_mode<synchronous>, transform_indices = @transform_3, window_bounds = array<i64: 3, 128>}, {transform_indices = @transform_4, window_bounds = array<i64: 128, 128>}]} {
    %c0 = arith.constant 0 : index
    %c0_0 = arith.constant 0 : index
    %0 = vector.load %arg1[%c0, %c0_0] : memref<128x16xi32, #tpu.memory_space<vmem>>, vector<128x16xi32>
    %c0_1 = arith.constant 0 : index
    %c0_2 = arith.constant 0 : index
    %1 = vector.load %arg2[%c0_1, %c0_2] : memref<128x128xbf16, #tpu.memory_space<vmem>>, vector<128x128xbf16>
    %c0_i32 = arith.constant 0 : i32
    %2 = vector.broadcast %c0_i32 : i32 to vector<128x16xi32>
    %3 = arith.cmpi sgt, %0, %2 : vector<128x16xi32>
    %4 = arith.extui %3 : vector<128x16xi1> to vector<128x16xi32>
    %5 = arith.sitofp %4 : vector<128x16xi32> to vector<128x16xf32>
    %cst = arith.constant dense<0.000000e+00> : vector<128xf32>
    %6 = vector.multi_reduction <add>, %5, %cst [1] : vector<128x16xf32> to vector<128xf32>
    %7 = vector.shape_cast %6 : vector<128xf32> to vector<128x1xf32>
    %8 = tpu.iota {dimensions = array<i32: 1>} : vector<1x128xi32>
    %cst_3 = arith.constant 0.000000e+00 : bf16
    %9 = vector.broadcast %cst_3 : bf16 to vector<128x128xbf16>
    %10 = vector.extract_strided_slice %0 {offsets = [0, 0], sizes = [128, 1], strides = [1, 1]} : vector<128x16xi32> to vector<128x1xi32>
    %11 = vector.broadcast %10 : vector<128x1xi32> to vector<128x128xi32>
    %12 = vector.broadcast %8 : vector<1x128xi32> to vector<128x128xi32>
    %13 = arith.cmpi eq, %11, %12 : vector<128x128xi32>
    %14 = arith.extui %13 : vector<128x128xi1> to vector<128x128xi32>
    %15 = arith.sitofp %14 : vector<128x128xi32> to vector<128x128xf32>
    %16 = arith.truncf %15 : vector<128x128xf32> to vector<128x128xbf16>
    %17 = arith.addf %9, %16 : vector<128x128xbf16>
    %18 = vector.extract_strided_slice %0 {offsets = [0, 1], sizes = [128, 1], strides = [1, 1]} : vector<128x16xi32> to vector<128x1xi32>
    %19 = vector.broadcast %18 : vector<128x1xi32> to vector<128x128xi32>
    %20 = vector.broadcast %8 : vector<1x128xi32> to vector<128x128xi32>
    %21 = arith.cmpi eq, %19, %20 : vector<128x128xi32>
    %22 = arith.extui %21 : vector<128x128xi1> to vector<128x128xi32>
    %23 = arith.sitofp %22 : vector<128x128xi32> to vector<128x128xf32>
    %24 = arith.truncf %23 : vector<128x128xf32> to vector<128x128xbf16>
    %25 = arith.addf %17, %24 : vector<128x128xbf16>
    %26 = vector.extract_strided_slice %0 {offsets = [0, 2], sizes = [128, 1], strides = [1, 1]} : vector<128x16xi32> to vector<128x1xi32>
    %27 = vector.broadcast %26 : vector<128x1xi32> to vector<128x128xi32>
    %28 = vector.broadcast %8 : vector<1x128xi32> to vector<128x128xi32>
    %29 = arith.cmpi eq, %27, %28 : vector<128x128xi32>
    %30 = arith.extui %29 : vector<128x128xi1> to vector<128x128xi32>
    %31 = arith.sitofp %30 : vector<128x128xi32> to vector<128x128xf32>
    %32 = arith.truncf %31 : vector<128x128xf32> to vector<128x128xbf16>
    %33 = arith.addf %25, %32 : vector<128x128xbf16>
    %34 = vector.extract_strided_slice %0 {offsets = [0, 3], sizes = [128, 1], strides = [1, 1]} : vector<128x16xi32> to vector<128x1xi32>
    %35 = vector.broadcast %34 : vector<128x1xi32> to vector<128x128xi32>
    %36 = vector.broadcast %8 : vector<1x128xi32> to vector<128x128xi32>
    %37 = arith.cmpi eq, %35, %36 : vector<128x128xi32>
    %38 = arith.extui %37 : vector<128x128xi1> to vector<128x128xi32>
    %39 = arith.sitofp %38 : vector<128x128xi32> to vector<128x128xf32>
    %40 = arith.truncf %39 : vector<128x128xf32> to vector<128x128xbf16>
    %41 = arith.addf %33, %40 : vector<128x128xbf16>
    %42 = vector.extract_strided_slice %0 {offsets = [0, 4], sizes = [128, 1], strides = [1, 1]} : vector<128x16xi32> to vector<128x1xi32>
    %43 = vector.broadcast %42 : vector<128x1xi32> to vector<128x128xi32>
    %44 = vector.broadcast %8 : vector<1x128xi32> to vector<128x128xi32>
    %45 = arith.cmpi eq, %43, %44 : vector<128x128xi32>
    %46 = arith.extui %45 : vector<128x128xi1> to vector<128x128xi32>
    %47 = arith.sitofp %46 : vector<128x128xi32> to vector<128x128xf32>
    %48 = arith.truncf %47 : vector<128x128xf32> to vector<128x128xbf16>
    %49 = arith.addf %41, %48 : vector<128x128xbf16>
    %50 = vector.extract_strided_slice %0 {offsets = [0, 5], sizes = [128, 1], strides = [1, 1]} : vector<128x16xi32> to vector<128x1xi32>
    %51 = vector.broadcast %50 : vector<128x1xi32> to vector<128x128xi32>
    %52 = vector.broadcast %8 : vector<1x128xi32> to vector<128x128xi32>
    %53 = arith.cmpi eq, %51, %52 : vector<128x128xi32>
    %54 = arith.extui %53 : vector<128x128xi1> to vector<128x128xi32>
    %55 = arith.sitofp %54 : vector<128x128xi32> to vector<128x128xf32>
    %56 = arith.truncf %55 : vector<128x128xf32> to vector<128x128xbf16>
    %57 = arith.addf %49, %56 : vector<128x128xbf16>
    %58 = vector.extract_strided_slice %0 {offsets = [0, 6], sizes = [128, 1], strides = [1, 1]} : vector<128x16xi32> to vector<128x1xi32>
    %59 = vector.broadcast %58 : vector<128x1xi32> to vector<128x128xi32>
    %60 = vector.broadcast %8 : vector<1x128xi32> to vector<128x128xi32>
    %61 = arith.cmpi eq, %59, %60 : vector<128x128xi32>
    %62 = arith.extui %61 : vector<128x128xi1> to vector<128x128xi32>
    %63 = arith.sitofp %62 : vector<128x128xi32> to vector<128x128xf32>
    %64 = arith.truncf %63 : vector<128x128xf32> to vector<128x128xbf16>
    %65 = arith.addf %57, %64 : vector<128x128xbf16>
    %66 = vector.extract_strided_slice %0 {offsets = [0, 7], sizes = [128, 1], strides = [1, 1]} : vector<128x16xi32> to vector<128x1xi32>
    %67 = vector.broadcast %66 : vector<128x1xi32> to vector<128x128xi32>
    %68 = vector.broadcast %8 : vector<1x128xi32> to vector<128x128xi32>
    %69 = arith.cmpi eq, %67, %68 : vector<128x128xi32>
    %70 = arith.extui %69 : vector<128x128xi1> to vector<128x128xi32>
    %71 = arith.sitofp %70 : vector<128x128xi32> to vector<128x128xf32>
    %72 = arith.truncf %71 : vector<128x128xf32> to vector<128x128xbf16>
    %73 = arith.addf %65, %72 : vector<128x128xbf16>
    %74 = vector.extract_strided_slice %0 {offsets = [0, 8], sizes = [128, 1], strides = [1, 1]} : vector<128x16xi32> to vector<128x1xi32>
    %75 = vector.broadcast %74 : vector<128x1xi32> to vector<128x128xi32>
    %76 = vector.broadcast %8 : vector<1x128xi32> to vector<128x128xi32>
    %77 = arith.cmpi eq, %75, %76 : vector<128x128xi32>
    %78 = arith.extui %77 : vector<128x128xi1> to vector<128x128xi32>
    %79 = arith.sitofp %78 : vector<128x128xi32> to vector<128x128xf32>
    %80 = arith.truncf %79 : vector<128x128xf32> to vector<128x128xbf16>
    %81 = arith.addf %73, %80 : vector<128x128xbf16>
    %82 = vector.extract_strided_slice %0 {offsets = [0, 9], sizes = [128, 1], strides = [1, 1]} : vector<128x16xi32> to vector<128x1xi32>
    %83 = vector.broadcast %82 : vector<128x1xi32> to vector<128x128xi32>
    %84 = vector.broadcast %8 : vector<1x128xi32> to vector<128x128xi32>
    %85 = arith.cmpi eq, %83, %84 : vector<128x128xi32>
    %86 = arith.extui %85 : vector<128x128xi1> to vector<128x128xi32>
    %87 = arith.sitofp %86 : vector<128x128xi32> to vector<128x128xf32>
    %88 = arith.truncf %87 : vector<128x128xf32> to vector<128x128xbf16>
    %89 = arith.addf %81, %88 : vector<128x128xbf16>
    %90 = vector.extract_strided_slice %0 {offsets = [0, 10], sizes = [128, 1], strides = [1, 1]} : vector<128x16xi32> to vector<128x1xi32>
    %91 = vector.broadcast %90 : vector<128x1xi32> to vector<128x128xi32>
    %92 = vector.broadcast %8 : vector<1x128xi32> to vector<128x128xi32>
    %93 = arith.cmpi eq, %91, %92 : vector<128x128xi32>
    %94 = arith.extui %93 : vector<128x128xi1> to vector<128x128xi32>
    %95 = arith.sitofp %94 : vector<128x128xi32> to vector<128x128xf32>
    %96 = arith.truncf %95 : vector<128x128xf32> to vector<128x128xbf16>
    %97 = arith.addf %89, %96 : vector<128x128xbf16>
    %98 = vector.extract_strided_slice %0 {offsets = [0, 11], sizes = [128, 1], strides = [1, 1]} : vector<128x16xi32> to vector<128x1xi32>
    %99 = vector.broadcast %98 : vector<128x1xi32> to vector<128x128xi32>
    %100 = vector.broadcast %8 : vector<1x128xi32> to vector<128x128xi32>
    %101 = arith.cmpi eq, %99, %100 : vector<128x128xi32>
    %102 = arith.extui %101 : vector<128x128xi1> to vector<128x128xi32>
    %103 = arith.sitofp %102 : vector<128x128xi32> to vector<128x128xf32>
    %104 = arith.truncf %103 : vector<128x128xf32> to vector<128x128xbf16>
    %105 = arith.addf %97, %104 : vector<128x128xbf16>
    %106 = vector.extract_strided_slice %0 {offsets = [0, 12], sizes = [128, 1], strides = [1, 1]} : vector<128x16xi32> to vector<128x1xi32>
    %107 = vector.broadcast %106 : vector<128x1xi32> to vector<128x128xi32>
    %108 = vector.broadcast %8 : vector<1x128xi32> to vector<128x128xi32>
    %109 = arith.cmpi eq, %107, %108 : vector<128x128xi32>
    %110 = arith.extui %109 : vector<128x128xi1> to vector<128x128xi32>
    %111 = arith.sitofp %110 : vector<128x128xi32> to vector<128x128xf32>
    %112 = arith.truncf %111 : vector<128x128xf32> to vector<128x128xbf16>
    %113 = arith.addf %105, %112 : vector<128x128xbf16>
    %114 = vector.extract_strided_slice %0 {offsets = [0, 13], sizes = [128, 1], strides = [1, 1]} : vector<128x16xi32> to vector<128x1xi32>
    %115 = vector.broadcast %114 : vector<128x1xi32> to vector<128x128xi32>
    %116 = vector.broadcast %8 : vector<1x128xi32> to vector<128x128xi32>
    %117 = arith.cmpi eq, %115, %116 : vector<128x128xi32>
    %118 = arith.extui %117 : vector<128x128xi1> to vector<128x128xi32>
    %119 = arith.sitofp %118 : vector<128x128xi32> to vector<128x128xf32>
    %120 = arith.truncf %119 : vector<128x128xf32> to vector<128x128xbf16>
    %121 = arith.addf %113, %120 : vector<128x128xbf16>
    %122 = vector.extract_strided_slice %0 {offsets = [0, 14], sizes = [128, 1], strides = [1, 1]} : vector<128x16xi32> to vector<128x1xi32>
    %123 = vector.broadcast %122 : vector<128x1xi32> to vector<128x128xi32>
    %124 = vector.broadcast %8 : vector<1x128xi32> to vector<128x128xi32>
    %125 = arith.cmpi eq, %123, %124 : vector<128x128xi32>
    %126 = arith.extui %125 : vector<128x128xi1> to vector<128x128xi32>
    %127 = arith.sitofp %126 : vector<128x128xi32> to vector<128x128xf32>
    %128 = arith.truncf %127 : vector<128x128xf32> to vector<128x128xbf16>
    %129 = arith.addf %121, %128 : vector<128x128xbf16>
    %130 = vector.extract_strided_slice %0 {offsets = [0, 15], sizes = [128, 1], strides = [1, 1]} : vector<128x16xi32> to vector<128x1xi32>
    %131 = vector.broadcast %130 : vector<128x1xi32> to vector<128x128xi32>
    %132 = vector.broadcast %8 : vector<1x128xi32> to vector<128x128xi32>
    %133 = arith.cmpi eq, %131, %132 : vector<128x128xi32>
    %134 = arith.extui %133 : vector<128x128xi1> to vector<128x128xi32>
    %135 = arith.sitofp %134 : vector<128x128xi32> to vector<128x128xf32>
    %136 = arith.truncf %135 : vector<128x128xf32> to vector<128x128xbf16>
    %137 = arith.addf %129, %136 : vector<128x128xbf16>
    %c0_i32_4 = arith.constant 0 : i32
    %138 = vector.broadcast %c0_i32_4 : i32 to vector<1x128xi32>
    %139 = arith.cmpi sgt, %8, %138 : vector<1x128xi32>
    %cst_5 = arith.constant 0.000000e+00 : bf16
    %140 = vector.shape_cast %139 : vector<1x128xi1> to vector<1x128xi1>
    %141 = vector.broadcast %140 : vector<1x128xi1> to vector<128x128xi1>
    %142 = vector.broadcast %cst_5 : bf16 to vector<128x128xbf16>
    %143 = arith.select %141, %137, %142 : vector<128x128xi1>, vector<128x128xbf16>
    %cst_6 = arith.constant dense<0.000000e+00> : vector<128x128xf32>
    %144 = tpu.matmul %143, %1, %cst_6 {dimension_numbers = #tpu.dot_dimension_numbers<[1], [0], [0], [1], [0, 0, 1, 1], [], []>} : vector<128x128xbf16>, vector<128x128xbf16>, vector<128x128xf32> -> vector<128x128xf32>
    %cst_7 = arith.constant 9.99999971E-10 : f32
    %145 = vector.broadcast %cst_7 : f32 to vector<128x1xf32>
    %146 = arith.addf %7, %145 : vector<128x1xf32>
    %147 = tpu.reciprocal %146 : vector<128x1xf32> -> vector<128x1xf32>
    %148 = vector.broadcast %147 : vector<128x1xf32> to vector<128x128xf32>
    %149 = arith.mulf %144, %148 : vector<128x128xf32>
    %150 = arith.truncf %149 : vector<128x128xf32> to vector<128x128xbf16>
    %c0_8 = arith.constant 0 : index
    %c0_9 = arith.constant 0 : index
    %151 = vector.load %arg3[%c0_8, %c0_9] : memref<128x128xbf16, #tpu.memory_space<vmem>>, vector<128x128xbf16>
    %cst_10 = arith.constant dense<0.000000e+00> : vector<128x128xf32>
    %152 = tpu.matmul %150, %151, %cst_10 {dimension_numbers = #tpu.dot_dimension_numbers<[1], [0], [0], [1], [0, 0, 1, 1], [], []>} : vector<128x128xbf16>, vector<128x128xbf16>, vector<128x128xf32> -> vector<128x128xf32>
    %c0_11 = arith.constant 0 : index
    %c0_12 = arith.constant 0 : index
    %153 = vector.load %arg4[%c0_11, %c0_12] : memref<3x128xf32, #tpu.memory_space<vmem>>, vector<1x128xf32>
    %c1 = arith.constant 1 : index
    %c0_13 = arith.constant 0 : index
    %154 = vector.load %arg4[%c1, %c0_13] : memref<3x128xf32, #tpu.memory_space<vmem>>, vector<1x128xf32>
    %c2 = arith.constant 2 : index
    %c0_14 = arith.constant 0 : index
    %155 = vector.load %arg4[%c2, %c0_14] : memref<3x128xf32, #tpu.memory_space<vmem>>, vector<1x128xf32>
    %156 = vector.broadcast %153 : vector<1x128xf32> to vector<128x128xf32>
    %157 = arith.addf %152, %156 : vector<128x128xf32>
    %cst_15 = arith.constant dense<0.000000e+00> : vector<128xf32>
    %158 = vector.multi_reduction <add>, %157, %cst_15 [1] : vector<128x128xf32> to vector<128xf32>
    %159 = vector.shape_cast %158 : vector<128xf32> to vector<128x1xf32>
    %cst_16 = arith.constant 1.280000e+02 : f32
    %160 = vector.broadcast %cst_16 : f32 to vector<128x1xf32>
    %161 = arith.divf %159, %160 : vector<128x1xf32>
    %162 = vector.broadcast %161 : vector<128x1xf32> to vector<128x128xf32>
    %163 = arith.subf %157, %162 : vector<128x128xf32>
    %164 = arith.mulf %163, %163 : vector<128x128xf32>
    %cst_17 = arith.constant dense<0.000000e+00> : vector<128xf32>
    %165 = vector.multi_reduction <add>, %164, %cst_17 [1] : vector<128x128xf32> to vector<128xf32>
    %166 = vector.shape_cast %165 : vector<128xf32> to vector<128x1xf32>
    %cst_18 = arith.constant 1.280000e+02 : f32
    %167 = vector.broadcast %cst_18 : f32 to vector<128x1xf32>
    %168 = arith.divf %166, %167 : vector<128x1xf32>
    %169 = vector.broadcast %161 : vector<128x1xf32> to vector<128x128xf32>
    %170 = arith.subf %157, %169 : vector<128x128xf32>
    %cst_19 = arith.constant 9.99999974E-6 : f32
    %171 = vector.broadcast %cst_19 : f32 to vector<128x1xf32>
    %172 = arith.addf %168, %171 : vector<128x1xf32>
    %173 = math.rsqrt %172 : vector<128x1xf32>
    %174 = vector.broadcast %173 : vector<128x1xf32> to vector<128x128xf32>
    %175 = arith.mulf %170, %174 : vector<128x128xf32>
    %176 = vector.broadcast %154 : vector<1x128xf32> to vector<128x128xf32>
    %177 = arith.mulf %175, %176 : vector<128x128xf32>
    %178 = vector.broadcast %155 : vector<1x128xf32> to vector<128x128xf32>
    %179 = arith.addf %177, %178 : vector<128x128xf32>
    %180 = arith.mulf %179, %179 : vector<128x128xf32>
    %cst_20 = arith.constant dense<0.000000e+00> : vector<128xf32>
    %181 = vector.multi_reduction <add>, %180, %cst_20 [1] : vector<128x128xf32> to vector<128xf32>
    %182 = vector.shape_cast %181 : vector<128xf32> to vector<128x1xf32>
    %cst_21 = arith.constant 1.000000e-24 : f32
    %183 = vector.broadcast %cst_21 : f32 to vector<128x1xf32>
    %184 = arith.maximumf %182, %183 : vector<128x1xf32>
    %185 = math.rsqrt %184 : vector<128x1xf32>
    %186 = vector.broadcast %185 : vector<128x1xf32> to vector<128x128xf32>
    %187 = arith.mulf %179, %186 : vector<128x128xf32>
    %c0_22 = arith.constant 0 : index
    %c0_23 = arith.constant 0 : index
    %188 = vector.load %arg5[%c0_22, %c0_23] : memref<128x128xf32, #tpu.memory_space<vmem>>, vector<128x128xf32>
    tpu.vector_store %arg5[%c0_22, %c0_23], %187 {strides = array<i32>} : memref<128x128xf32, #tpu.memory_space<vmem>>, vector<128x128xf32>,
    return
  }
  func.func @transform_0(%arg0: i32) -> (i32, i32) {
    %c0_i32 = arith.constant 0 : i32
    %c0_i32_0 = arith.constant 0 : i32
    return %arg0, %c0_i32 : i32, i32
  }
  func.func @transform_1(%arg0: i32) -> (i32, i32) {
    %c0_i32 = arith.constant 0 : i32
    %c0_i32_0 = arith.constant 0 : i32
    %c0_i32_1 = arith.constant 0 : i32
    return %c0_i32, %c0_i32_0 : i32, i32
  }
  func.func @transform_2(%arg0: i32) -> (i32, i32) {
    %c0_i32 = arith.constant 0 : i32
    %c0_i32_0 = arith.constant 0 : i32
    %c0_i32_1 = arith.constant 0 : i32
    return %c0_i32, %c0_i32_0 : i32, i32
  }
  func.func @transform_3(%arg0: i32) -> (i32, i32) {
    %c0_i32 = arith.constant 0 : i32
    %c0_i32_0 = arith.constant 0 : i32
    %c0_i32_1 = arith.constant 0 : i32
    return %c0_i32, %c0_i32_0 : i32, i32
  }
  func.func @transform_4(%arg0: i32) -> (i32, i32) {
    %c0_i32 = arith.constant 0 : i32
    %c0_i32_0 = arith.constant 0 : i32
    return %arg0, %c0_i32 : i32, i32
  }
}

</mosaic_0001>

<llo_original>
// kernel: tpu_custom_call.1
$region0: #{tpu_custom_call.1}
  #allocation0 [shape = 'u32[]', space=smem, size = 0x4, offset = 0x4, fixed_abs, tag = 'smem constant byte address 0x4 - core index']
  #allocation1 [shape = 'u32[144,128]{1,0:T(1,128)}', space=vmem, size = 0x12000, scoped, tag = 'internal scratch']
  %s0 = inlined_call_operand.vmem [shape: s32[256,16], index: 0, kind: input, shape index: {}]
  %s1 = inlined_call_operand.vmem [shape: bf16[128,128], index: 1, kind: input, shape index: {}]
  %s2 = inlined_call_operand.vmem [shape: bf16[128,128], index: 2, kind: input, shape index: {}]
  %s3 = inlined_call_operand.vmem [shape: f32[3,128], index: 3, kind: input, shape index: {}]
  %s4 = inlined_call_operand.hbm [shape: f32[256,128], index: 4, kind: output, shape index: {}]
  %s5 = sld [smem:[#allocation0]]
  $region49: #{tpu_custom_call.1} parent=0
    _
  %s7 = ssub.s32 1, %s5
  %s8 = scalar_select 0, %s7, %s5
  $region1: #{tpu_custom_call.1} parent=0
    #allocation2 [shape = 'u8[131072]{0}', space=vmem, size = 0x20000, scoped, tag = 'output window, operand 0']
    #allocation3 [shape = 's32[2]{0}', space=sflag, size = 0x8, scoped, tag = 'scoped memory for tpu_custom_call.1']
    %9 = vsyncpa [#allocation3], 0
    %s10 = scalar_lea.sflag [#allocation3], 1
    %11 = vsyncpa %s10, 0
    loop: start=0, step=1, limit=4
    $region2: #{tpu_custom_call.1} parent=1 // loop_pre_header
      _
    $region3: #{tpu_custom_call.1} parent=1 // loop_header
      %s13 = sphi 0, %s17
      %p14 = scmp.ge.s32.totalorder %s13, 4
      %s23 = sphi 0, %s25
      %s26 = sphi 0, %s23
      %s27 = sphi 0, %s26
      %s43 = sphi 0, %s27
      %s47 = sphi 0, %s47
      %s49 = sphi 0, %s47
      %s50 = sphi 0, %s49
      %s64 = sphi 0, %s50
      %s68 = sphi 0, %s68
      %s70 = sphi 0, %s68
      %s71 = sphi 0, %s70
      %s85 = sphi 0, %s71
      %s89 = sphi 0, %s89
      %s91 = sphi 0, %s89
      %s92 = sphi 0, %s91
      %s106 = sphi 0, %s92
      %s112 = sphi 0, %s114
      %s115 = sphi 0, %s112
      %s116 = sphi 0, %s115
      %s132 = sphi 0, %s116
    $region4: #{tpu_custom_call.1} parent=1 // loop_header_branch
      %16 = sbr.rel (%p14) target = $region8
    $region5: #{tpu_custom_call.1} parent=1 // loop_body
      %s18 = ssub.s32 %s13, 1
      %s19 = ssub.s32 %s13, 2
      %s20 = sadd.s32 %s13, 1
      %s21 = ssub.s32 %s13, %s20
      %p22 = scmp.eq.s32.totalorder %s21, 0
      %s24 = sadd.s32 %s23, 1
      %s25 = scalar_select %p22, %s23, %s24
      %p28 = pneg %p22
      %p29 = scmp.eq.s32.totalorder %s13, 1
      %p30 = por %p28, %p29
      %p31 = scmp.ne.s32.totalorder %s23, %s26
      %p32 = scmp.eq.s32.totalorder %s13, 0
      %p33 = por %p31, %p32
      %p34 = scmp.ne.s32.totalorder %s23, %s26
      %p35 = scmp.eq.s32.totalorder %s18, 1
      %p36 = por %p34, %p35
      %p37 = scmp.ne.s32.totalorder %s26, %s27
      %p38 = scmp.eq.s32.totalorder %s18, 0
      %p39 = por %p37, %p38
      %p40 = scmp.ne.s32.totalorder %s26, %s27
      %p41 = scmp.eq.s32.totalorder %s19, 1
      %p42 = por %p40, %p41
      %p44 = scmp.ne.s32.totalorder %s27, %s43
      %p45 = scmp.eq.s32.totalorder %s19, 0
      %p46 = por %p44, %p45
      %s48 = sadd.s32 %s47, 1
      %p51 = scmp.eq.s32.totalorder %s13, 1
      %p52 = scmp.ne.s32.totalorder %s47, %s49
      %p53 = scmp.eq.s32.totalorder %s13, 0
      %p54 = por %p52, %p53
      %p55 = scmp.ne.s32.totalorder %s47, %s49
      %p56 = scmp.eq.s32.totalorder %s18, 1
      %p57 = por %p55, %p56
      %p58 = scmp.ne.s32.totalorder %s49, %s50
      %p59 = scmp.eq.s32.totalorder %s18, 0
      %p60 = por %p58, %p59
      %p61 = scmp.ne.s32.totalorder %s49, %s50
      %p62 = scmp.eq.s32.totalorder %s19, 1
      %p63 = por %p61, %p62
      %p65 = scmp.ne.s32.totalorder %s50, %s64
      %p66 = scmp.eq.s32.totalorder %s19, 0
      %p67 = por %p65, %p66
      %s69 = sadd.s32 %s68, 1
      %p72 = scmp.eq.s32.totalorder %s13, 1
      %p73 = scmp.ne.s32.totalorder %s68, %s70
      %p74 = scmp.eq.s32.totalorder %s13, 0
      %p75 = por %p73, %p74
      %p76 = scmp.ne.s32.totalorder %s68, %s70
      %p77 = scmp.eq.s32.totalorder %s18, 1
      %p78 = por %p76, %p77
      %p79 = scmp.ne.s32.totalorder %s70, %s71
      %p80 = scmp.eq.s32.totalorder %s18, 0
      %p81 = por %p79, %p80
      %p82 = scmp.ne.s32.totalorder %s70, %s71
      %p83 = scmp.eq.s32.totalorder %s19, 1
      %p84 = por %p82, %p83
      %p86 = scmp.ne.s32.totalorder %s71, %s85
      %p87 = scmp.eq.s32.totalorder %s19, 0
      %p88 = por %p86, %p87
      %s90 = sadd.s32 %s89, 1
      %p93 = scmp.eq.s32.totalorder %s13, 1
      %p94 = scmp.ne.s32.totalorder %s89, %s91
      %p95 = scmp.eq.s32.totalorder %s13, 0
      %p96 = por %p94, %p95
      %p97 = scmp.ne.s32.totalorder %s89, %s91
      %p98 = scmp.eq.s32.totalorder %s18, 1
      %p99 = por %p97, %p98
      %p100 = scmp.ne.s32.totalorder %s91, %s92
      %p101 = scmp.eq.s32.totalorder %s18, 0
      %p102 = por %p100, %p101
      %p103 = scmp.ne.s32.totalorder %s91, %s92
      %p104 = scmp.eq.s32.totalorder %s19, 1
      %p105 = por %p103, %p104
      %p107 = scmp.ne.s32.totalorder %s92, %s106
      %p108 = scmp.eq.s32.totalorder %s19, 0
      %p109 = por %p107, %p108
      %s110 = ssub.s32 %s13, %s20
      %p111 = scmp.eq.s32.totalorder %s110, 0
      %s113 = sadd.s32 %s112, 1
      %s114 = scalar_select %p111, %s112, %s113
      %p117 = pneg %p111
      %p118 = scmp.eq.s32.totalorder %s13, 1
      %p119 = por %p117, %p118
      %p120 = scmp.ne.s32.totalorder %s112, %s115
      %p121 = scmp.eq.s32.totalorder %s13, 0
      %p122 = por %p120, %p121
      %p123 = scmp.ne.s32.totalorder %s112, %s115
      %p124 = scmp.eq.s32.totalorder %s18, 1
      %p125 = por %p123, %p124
      %p126 = scmp.ne.s32.totalorder %s115, %s116
      %p127 = scmp.eq.s32.totalorder %s18, 0
      %p128 = por %p126, %p127
      %p129 = scmp.ne.s32.totalorder %s115, %s116
      %p130 = scmp.eq.s32.totalorder %s19, 1
      %p131 = por %p129, %p130
      %p133 = scmp.ne.s32.totalorder %s116, %s132
      %p134 = scmp.eq.s32.totalorder %s19, 0
      %p135 = por %p133, %p134
      %p136 = scmp.le.s32.totalorder 1, %s13
      %p137 = scmp.lt.s32.totalorder %s13, 3
      %p138 = pnand %p136, %p137
      %p139 = pneg %p138
      // Predicated region
      $region9: #{tpu_custom_call.1} parent=5 // pred_check
        _
      $region10: #{tpu_custom_call.1} parent=5 // pred_check_branch
        %141 = sbr.rel (%p138) target = $region12
      $region11: #{tpu_custom_call.1} parent=5 // pred_region
        %s142 = ssub.s32 %s13, 1
        // Predicated region
        $region13: #{tpu_custom_call.1} parent=11 // pred_check
          %p143 = pneg %p60
        $region14: #{tpu_custom_call.1} parent=11 // pred_check_branch
          %145 = sbr.rel (%p143) target = $region16
        $region15: #{tpu_custom_call.1} parent=11 // pred_region
          _
        $region16: #{tpu_custom_call.1} parent=11 // pred_fallthru
          _
        // Predicated region
        $region17: #{tpu_custom_call.1} parent=11 // pred_check
          %p146 = pneg %p81
        $region18: #{tpu_custom_call.1} parent=11 // pred_check_branch
          %148 = sbr.rel (%p146) target = $region20
        $region19: #{tpu_custom_call.1} parent=11 // pred_region
          _
        $region20: #{tpu_custom_call.1} parent=11 // pred_fallthru
          _
        // Predicated region
        $region21: #{tpu_custom_call.1} parent=11 // pred_check
          %p149 = pneg %p102
        $region22: #{tpu_custom_call.1} parent=11 // pred_check_branch
          %151 = sbr.rel (%p149) target = $region24
        $region23: #{tpu_custom_call.1} parent=11 // pred_region
          _
        $region24: #{tpu_custom_call.1} parent=11 // pred_fallthru
          _
      $region12: #{tpu_custom_call.1} parent=5 // pred_fallthru
        _
      %p152 = scmp.lt.s32.totalorder %s13, 2
      // Predicated region
      $region25: #{tpu_custom_call.1} parent=5 // pred_check
        %p153 = pneg %p152
      $region26: #{tpu_custom_call.1} parent=5 // pred_check_branch
        %155 = sbr.rel (%p153) target = $region28
      $region27: #{tpu_custom_call.1} parent=5 // pred_region
        // Predicated region
        $region29: #{tpu_custom_call.1} parent=27 // pred_check
          %p156 = pneg %p33
        $region30: #{tpu_custom_call.1} parent=27 // pred_check_branch
          %158 = sbr.rel (%p156) target = $region32
        $region31: #{tpu_custom_call.1} parent=27 // pred_region
          %s159 = smul.u32 16, %s13
          %p160 = scmp.lt.s32.totalorder %s159, 31
          %s161 = scalar_select %p160, %s159, 31
          %s162 = smul.addr %s161, 8
          %s163 = scalar_lea.vmem %s0, %s162
          %s164 = smul.u32 16, %s13
        $region32: #{tpu_custom_call.1} parent=27 // pred_fallthru
          _
      $region28: #{tpu_custom_call.1} parent=5 // pred_fallthru
        _
      %p165 = scmp.le.s32.totalorder 1, %s13
      %p166 = scmp.lt.s32.totalorder %s13, 3
      %p167 = pnand %p165, %p166
      %p168 = pneg %p167
      // Predicated region
      $region33: #{tpu_custom_call.1} parent=5 // pred_check
        _
      $region34: #{tpu_custom_call.1} parent=5 // pred_check_branch
        %170 = sbr.rel (%p167) target = $region36
      $region35: #{tpu_custom_call.1} parent=5 // pred_region
        %s171 = ssub.s32 %s13, 1
        %s172 = smul.u32 16, %s18
        %p173 = scmp.lt.s32.totalorder %s172, 31
        %s174 = scalar_select %p173, %s172, 31
        %s175 = smul.addr %s174, 8
        %s176 = scalar_lea.vmem %s0, %s175
        %p177 = pneg %p39
        %p178 = pneg %p36
        %p179 = pneg %p60
        %p180 = pneg %p57
        %p181 = pneg %p81
        %p182 = pneg %p78
        %p183 = pneg %p102
        %p184 = pneg %p99
        %p185 = pneg %p128
        %p186 = pneg %p125
        %s187 = sand.u32 %s115, 1
        %s188 = scalar_lea.sflag [#allocation3], %s187
        %s189 = sand.u32 %s115, 1
        %s190 = smul.addr %s189, 128
        %s191 = scalar_lea.vmem [#allocation2], %s190
        %s192 = smul.u32 16, %s18
        %p193 = scmp.lt.s32.totalorder %s192, 31
        %s194 = scalar_select %p193, %s192, 31
        %s195 = smul.addr %s194, 8
        %s196 = scalar_lea.vmem %s0, %s195
        %s197 = smul.u32 16, %s18
        %s198 = smul.u32 16, %s18
        %v202 = vld [vmem:[%s196] sm:$0xff]
        %v203 = vld [vmem:[%s196 + $0x8] sm:$0xff]
        %v204 = vld [vmem:[%s196 + $0x10] sm:$0xff]
        %v205 = vld [vmem:[%s196 + $0x18] sm:$0xff]
        %v206 = vld [vmem:[%s196 + $0x20] sm:$0xff]
        %v207 = vld [vmem:[%s196 + $0x28] sm:$0xff]
        %v208 = vld [vmem:[%s196 + $0x30] sm:$0xff]
        %v209 = vld [vmem:[%s196 + $0x38] sm:$0xff]
        %v210 = vld [vmem:[%s196 + $0x40] sm:$0xff]
        %v211 = vld [vmem:[%s196 + $0x48] sm:$0xff]
        %v212 = vld [vmem:[%s196 + $0x50] sm:$0xff]
        %v213 = vld [vmem:[%s196 + $0x58] sm:$0xff]
        %v214 = vld [vmem:[%s196 + $0x60] sm:$0xff]
        %v215 = vld [vmem:[%s196 + $0x68] sm:$0xff]
        %v216 = vld [vmem:[%s196 + $0x70] sm:$0xff]
        %v217 = vld [vmem:[%s196 + $0x78] sm:$0xff]
        %v218 = vld [vmem:[%s1] sm:$0xf]
        %v219 = vld [vmem:[%s1 + $0x4] sm:$0xf]
        %v220 = vld [vmem:[%s1 + $0x8] sm:$0xf]
        %v221 = vld [vmem:[%s1 + $0xc] sm:$0xf]
        %v222 = vld [vmem:[%s1 + $0x10] sm:$0xf]
        %v223 = vld [vmem:[%s1 + $0x14] sm:$0xf]
        %v224 = vld [vmem:[%s1 + $0x18] sm:$0xf]
        %v225 = vld [vmem:[%s1 + $0x1c] sm:$0xf]
        %v226 = vld [vmem:[%s1 + $0x20] sm:$0xf]
        %v227 = vld [vmem:[%s1 + $0x24] sm:$0xf]
        %v228 = vld [vmem:[%s1 + $0x28] sm:$0xf]
        %v229 = vld [vmem:[%s1 + $0x2c] sm:$0xf]
        %v230 = vld [vmem:[%s1 + $0x30] sm:$0xf]
        %v231 = vld [vmem:[%s1 + $0x34] sm:$0xf]
        %v232 = vld [vmem:[%s1 + $0x38] sm:$0xf]
        %v233 = vld [vmem:[%s1 + $0x3c] sm:$0xf]
        %vm234 = vcmp.gt.s32.totalorder %v202, 0
        %vm235 = vcmp.gt.s32.totalorder %v203, 0
        %vm236 = vcmp.gt.s32.totalorder %v204, 0
        %vm237 = vcmp.gt.s32.totalorder %v205, 0
        %vm238 = vcmp.gt.s32.totalorder %v206, 0
        %vm239 = vcmp.gt.s32.totalorder %v207, 0
        %vm240 = vcmp.gt.s32.totalorder %v208, 0
        %vm241 = vcmp.gt.s32.totalorder %v209, 0
        %vm242 = vcmp.gt.s32.totalorder %v210, 0
        %vm243 = vcmp.gt.s32.totalorder %v211, 0
        %vm244 = vcmp.gt.s32.totalorder %v212, 0
        %vm245 = vcmp.gt.s32.totalorder %v213, 0
        %vm246 = vcmp.gt.s32.totalorder %v214, 0
        %vm247 = vcmp.gt.s32.totalorder %v215, 0
        %vm248 = vcmp.gt.s32.totalorder %v216, 0
        %vm249 = vcmp.gt.s32.totalorder %v217, 0
        %v250 = vsel %vm234, 1, 0
        %v251 = vsel %vm235, 1, 0
        %v252 = vsel %vm236, 1, 0
        %v253 = vsel %vm237, 1, 0
        %v254 = vsel %vm238, 1, 0
        %v255 = vsel %vm239, 1, 0
        %v256 = vsel %vm240, 1, 0
        %v257 = vsel %vm241, 1, 0
        %v258 = vsel %vm242, 1, 0
        %v259 = vsel %vm243, 1, 0
        %v260 = vsel %vm244, 1, 0
        %v261 = vsel %vm245, 1, 0
        %v262 = vsel %vm246, 1, 0
        %v263 = vsel %vm247, 1, 0
        %v264 = vsel %vm248, 1, 0
        %v265 = vsel %vm249, 1, 0
        %v266 = vcvt.s32.f32 %v250
        %v267 = vcvt.s32.f32 %v251
        %v268 = vcvt.s32.f32 %v252
        %v269 = vcvt.s32.f32 %v253
        %v270 = vcvt.s32.f32 %v254
        %v271 = vcvt.s32.f32 %v255
        %v272 = vcvt.s32.f32 %v256
        %v273 = vcvt.s32.f32 %v257
        %v274 = vcvt.s32.f32 %v258
        %v275 = vcvt.s32.f32 %v259
        %v276 = vcvt.s32.f32 %v260
        %v277 = vcvt.s32.f32 %v261
        %v278 = vcvt.s32.f32 %v262
        %v279 = vcvt.s32.f32 %v263
        %v280 = vcvt.s32.f32 %v264
        %v281 = vcvt.s32.f32 %v265
        %vm282 = vcmask 130048
        %v283 = vsel %vm282, %v266, 0.0
        %284 = vadd.xlane.f32.xlu0 %v283
        %v285 = vpop.xlane.xlu0 %284
        %v286 = vsel %vm282, %v267, 0.0
        %287 = vadd.xlane.f32.xlu0 %v286
        %v288 = vpop.xlane.xlu0 %287
        %v289 = vsel %vm282, %v268, 0.0
        %290 = vadd.xlane.f32.xlu0 %v289
        %v291 = vpop.xlane.xlu0 %290
        %v292 = vsel %vm282, %v269, 0.0
        %293 = vadd.xlane.f32.xlu0 %v292
        %v294 = vpop.xlane.xlu0 %293
        %v295 = vsel %vm282, %v270, 0.0
        %296 = vadd.xlane.f32.xlu0 %v295
        %v297 = vpop.xlane.xlu0 %296
        %v298 = vsel %vm282, %v271, 0.0
        %299 = vadd.xlane.f32.xlu0 %v298
        %v300 = vpop.xlane.xlu0 %299
        %v301 = vsel %vm282, %v272, 0.0
        %302 = vadd.xlane.f32.xlu0 %v301
        %v303 = vpop.xlane.xlu0 %302
        %v304 = vsel %vm282, %v273, 0.0
        %305 = vadd.xlane.f32.xlu0 %v304
        %v306 = vpop.xlane.xlu0 %305
        %v307 = vsel %vm282, %v274, 0.0
        %308 = vadd.xlane.f32.xlu0 %v307
        %v309 = vpop.xlane.xlu0 %308
        %v310 = vsel %vm282, %v275, 0.0
        %311 = vadd.xlane.f32.xlu0 %v310
        %v312 = vpop.xlane.xlu0 %311
        %v313 = vsel %vm282, %v276, 0.0
        %314 = vadd.xlane.f32.xlu0 %v313
        %v315 = vpop.xlane.xlu0 %314
        %v316 = vsel %vm282, %v277, 0.0
        %317 = vadd.xlane.f32.xlu0 %v316
        %v318 = vpop.xlane.xlu0 %317
        %v319 = vsel %vm282, %v278, 0.0
        %320 = vadd.xlane.f32.xlu0 %v319
        %v321 = vpop.xlane.xlu0 %320
        %v322 = vsel %vm282, %v279, 0.0
        %323 = vadd.xlane.f32.xlu0 %v322
        %v324 = vpop.xlane.xlu0 %323
        %v325 = vsel %vm282, %v280, 0.0
        %326 = vadd.xlane.f32.xlu0 %v325
        %v327 = vpop.xlane.xlu0 %326
        %v328 = vsel %vm282, %v281, 0.0
        %329 = vadd.xlane.f32.xlu0 %v328
        %v330 = vpop.xlane.xlu0 %329
        %v331 = vlaneseq
        %v332 = vand.u32 %v331, 127
        %333 = vset.pattern.permute.xlu0 0
        %334 = vperm.xlu0 %333, %v202
        %v335 = vpop.permute.xlu0 %334
        %336 = vset.pattern.permute.xlu0 0
        %337 = vperm.xlu0 %336, %v203
        %v338 = vpop.permute.xlu0 %337
        %339 = vset.pattern.permute.xlu0 0
        %340 = vperm.xlu0 %339, %v204
        %v341 = vpop.permute.xlu0 %340
        %342 = vset.pattern.permute.xlu0 0
        %343 = vperm.xlu0 %342, %v205
        %v344 = vpop.permute.xlu0 %343
        %345 = vset.pattern.permute.xlu0 0
        %346 = vperm.xlu0 %345, %v206
        %v347 = vpop.permute.xlu0 %346
        %348 = vset.pattern.permute.xlu0 0
        %349 = vperm.xlu0 %348, %v207
        %v350 = vpop.permute.xlu0 %349
        %351 = vset.pattern.permute.xlu0 0
        %352 = vperm.xlu0 %351, %v208
        %v353 = vpop.permute.xlu0 %352
        %354 = vset.pattern.permute.xlu0 0
        %355 = vperm.xlu0 %354, %v209
        %v356 = vpop.permute.xlu0 %355
        %357 = vset.pattern.permute.xlu0 0
        %358 = vperm.xlu0 %357, %v210
        %v359 = vpop.permute.xlu0 %358
        %360 = vset.pattern.permute.xlu0 0
        %361 = vperm.xlu0 %360, %v211
        %v362 = vpop.permute.xlu0 %361
        %363 = vset.pattern.permute.xlu0 0
        %364 = vperm.xlu0 %363, %v212
        %v365 = vpop.permute.xlu0 %364
        %366 = vset.pattern.permute.xlu0 0
        %367 = vperm.xlu0 %366, %v213
        %v368 = vpop.permute.xlu0 %367
        %369 = vset.pattern.permute.xlu0 0
        %370 = vperm.xlu0 %369, %v214
        %v371 = vpop.permute.xlu0 %370
        %372 = vset.pattern.permute.xlu0 0
        %373 = vperm.xlu0 %372, %v215
        %v374 = vpop.permute.xlu0 %373
        %375 = vset.pattern.permute.xlu0 0
        %376 = vperm.xlu0 %375, %v216
        %v377 = vpop.permute.xlu0 %376
        %378 = vset.pattern.permute.xlu0 0
        %379 = vperm.xlu0 %378, %v217
        %v380 = vpop.permute.xlu0 %379
        %vm381 = vcmp.eq.s32.totalorder %v335, %v332
        %vm382 = vcmp.eq.s32.totalorder %v338, %v332
        %vm383 = vcmp.eq.s32.totalorder %v341, %v332
        %vm384 = vcmp.eq.s32.totalorder %v344, %v332
        %vm385 = vcmp.eq.s32.totalorder %v347, %v332
        %vm386 = vcmp.eq.s32.totalorder %v350, %v332
        %vm387 = vcmp.eq.s32.totalorder %v353, %v332
        %vm388 = vcmp.eq.s32.totalorder %v356, %v332
        %vm389 = vcmp.eq.s32.totalorder %v359, %v332
        %vm390 = vcmp.eq.s32.totalorder %v362, %v332
        %vm391 = vcmp.eq.s32.totalorder %v365, %v332
        %vm392 = vcmp.eq.s32.totalorder %v368, %v332
        %vm393 = vcmp.eq.s32.totalorder %v371, %v332
        %vm394 = vcmp.eq.s32.totalorder %v374, %v332
        %vm395 = vcmp.eq.s32.totalorder %v377, %v332
        %vm396 = vcmp.eq.s32.totalorder %v380, %v332
        %v397 = vsel %vm381, 1, 0
        %v398 = vsel %vm382, 1, 0
        %v399 = vsel %vm383, 1, 0
        %v400 = vsel %vm384, 1, 0
        %v401 = vsel %vm385, 1, 0
        %v402 = vsel %vm386, 1, 0
        %v403 = vsel %vm387, 1, 0
        %v404 = vsel %vm388, 1, 0
        %v405 = vsel %vm389, 1, 0
        %v406 = vsel %vm390, 1, 0
        %v407 = vsel %vm391, 1, 0
        %v408 = vsel %vm392, 1, 0
        %v409 = vsel %vm393, 1, 0
        %v410 = vsel %vm394, 1, 0
        %v411 = vsel %vm395, 1, 0
        %v412 = vsel %vm396, 1, 0
        %v413 = vcvt.s32.f32 %v397
        %v414 = vcvt.s32.f32 %v398
        %v415 = vcvt.s32.f32 %v399
        %v416 = vcvt.s32.f32 %v400
        %v417 = vcvt.s32.f32 %v401
        %v418 = vcvt.s32.f32 %v402
        %v419 = vcvt.s32.f32 %v403
        %v420 = vcvt.s32.f32 %v404
        %v421 = vcvt.s32.f32 %v405
        %v422 = vcvt.s32.f32 %v406
        %v423 = vcvt.s32.f32 %v407
        %v424 = vcvt.s32.f32 %v408
        %v425 = vcvt.s32.f32 %v409
        %v426 = vcvt.s32.f32 %v410
        %v427 = vcvt.s32.f32 %v411
        %v428 = vcvt.s32.f32 %v412
        %v429 = vpack.c.bf16 %v414, %v413
        %v430 = vpack.c.bf16 %v416, %v415
        %v431 = vpack.c.bf16 %v418, %v417
        %v432 = vpack.c.bf16 %v420, %v419
        %v433 = vpack.c.bf16 %v422, %v421
        %v434 = vpack.c.bf16 %v424, %v423
        %v435 = vpack.c.bf16 %v426, %v425
        %v436 = vpack.c.bf16 %v428, %v427
        %v437 = vadd.bf16 %v429, 0
        %v438 = vadd.bf16 %v430, 0
        %v439 = vadd.bf16 %v431, 0
        %v440 = vadd.bf16 %v432, 0
        %v441 = vadd.bf16 %v433, 0
        %v442 = vadd.bf16 %v434, 0
        %v443 = vadd.bf16 %v435, 0
        %v444 = vadd.bf16 %v436, 0
        %445 = vset.pattern.permute.xlu0 1
        %446 = vperm.xlu0 %445, %v202
        %v447 = vpop.permute.xlu0 %446
        %448 = vset.pattern.permute.xlu0 1
        %449 = vperm.xlu0 %448, %v203
        %v450 = vpop.permute.xlu0 %449
        %451 = vset.pattern.permute.xlu0 1
        %452 = vperm.xlu0 %451, %v204
        %v453 = vpop.permute.xlu0 %452
        %454 = vset.pattern.permute.xlu0 1
        %455 = vperm.xlu0 %454, %v205
        %v456 = vpop.permute.xlu0 %455
        %457 = vset.pattern.permute.xlu0 1
        %458 = vperm.xlu0 %457, %v206
        %v459 = vpop.permute.xlu0 %458
        %460 = vset.pattern.permute.xlu0 1
        %461 = vperm.xlu0 %460, %v207
        %v462 = vpop.permute.xlu0 %461
        %463 = vset.pattern.permute.xlu0 1
        %464 = vperm.xlu0 %463, %v208
        %v465 = vpop.permute.xlu0 %464
        %466 = vset.pattern.permute.xlu0 1
        %467 = vperm.xlu0 %466, %v209
        %v468 = vpop.permute.xlu0 %467
        %469 = vset.pattern.permute.xlu0 1
        %470 = vperm.xlu0 %469, %v210
        %v471 = vpop.permute.xlu0 %470
        %472 = vset.pattern.permute.xlu0 1
        %473 = vperm.xlu0 %472, %v211
        %v474 = vpop.permute.xlu0 %473
        %475 = vset.pattern.permute.xlu0 1
        %476 = vperm.xlu0 %475, %v212
        %v477 = vpop.permute.xlu0 %476
        %478 = vset.pattern.permute.xlu0 1
        %479 = vperm.xlu0 %478, %v213
        %v480 = vpop.permute.xlu0 %479
        %481 = vset.pattern.permute.xlu0 1
        %482 = vperm.xlu0 %481, %v214
        %v483 = vpop.permute.xlu0 %482
        %484 = vset.pattern.permute.xlu0 1
        %485 = vperm.xlu0 %484, %v215
        %v486 = vpop.permute.xlu0 %485
        %487 = vset.pattern.permute.xlu0 1
        %488 = vperm.xlu0 %487, %v216
        %v489 = vpop.permute.xlu0 %488
        %490 = vset.pattern.permute.xlu0 1
        %491 = vperm.xlu0 %490, %v217
        %v492 = vpop.permute.xlu0 %491
        %vm493 = vcmp.eq.s32.totalorder %v447, %v332
        %vm494 = vcmp.eq.s32.totalorder %v450, %v332
        %vm495 = vcmp.eq.s32.totalorder %v453, %v332
        %vm496 = vcmp.eq.s32.totalorder %v456, %v332
        %vm497 = vcmp.eq.s32.totalorder %v459, %v332
        %vm498 = vcmp.eq.s32.totalorder %v462, %v332
        %vm499 = vcmp.eq.s32.totalorder %v465, %v332
        %vm500 = vcmp.eq.s32.totalorder %v468, %v332
        %vm501 = vcmp.eq.s32.totalorder %v471, %v332
        %vm502 = vcmp.eq.s32.totalorder %v474, %v332
        %vm503 = vcmp.eq.s32.totalorder %v477, %v332
        %vm504 = vcmp.eq.s32.totalorder %v480, %v332
        %vm505 = vcmp.eq.s32.totalorder %v483, %v332
        %vm506 = vcmp.eq.s32.totalorder %v486, %v332
        %vm507 = vcmp.eq.s32.totalorder %v489, %v332
        %vm508 = vcmp.eq.s32.totalorder %v492, %v332
        %v509 = vsel %vm493, 1, 0
        %v510 = vsel %vm494, 1, 0
        %v511 = vsel %vm495, 1, 0
        %v512 = vsel %vm496, 1, 0
        %v513 = vsel %vm497, 1, 0
        %v514 = vsel %vm498, 1, 0
        %v515 = vsel %vm499, 1, 0
        %v516 = vsel %vm500, 1, 0
        %v517 = vsel %vm501, 1, 0
        %v518 = vsel %vm502, 1, 0
        %v519 = vsel %vm503, 1, 0
        %v520 = vsel %vm504, 1, 0
        %v521 = vsel %vm505, 1, 0
        %v522 = vsel %vm506, 1, 0
        %v523 = vsel %vm507, 1, 0
        %v524 = vsel %vm508, 1, 0
        %v525 = vcvt.s32.f32 %v509
        %v526 = vcvt.s32.f32 %v510
        %v527 = vcvt.s32.f32 %v511
        %v528 = vcvt.s32.f32 %v512
        %v529 = vcvt.s32.f32 %v513
        %v530 = vcvt.s32.f32 %v514
        %v531 = vcvt.s32.f32 %v515
        %v532 = vcvt.s32.f32 %v516
        %v533 = vcvt.s32.f32 %v517
        %v534 = vcvt.s32.f32 %v518
        %v535 = vcvt.s32.f32 %v519
        %v536 = vcvt.s32.f32 %v520
        %v537 = vcvt.s32.f32 %v521
        %v538 = vcvt.s32.f32 %v522
        %v539 = vcvt.s32.f32 %v523
        %v540 = vcvt.s32.f32 %v524
        %v541 = vpack.c.bf16 %v526, %v525
        %v542 = vpack.c.bf16 %v528, %v527
        %v543 = vpack.c.bf16 %v530, %v529
        %v544 = vpack.c.bf16 %v532, %v531
        %v545 = vpack.c.bf16 %v534, %v533
        %v546 = vpack.c.bf16 %v536, %v535
        %v547 = vpack.c.bf16 %v538, %v537
        %v548 = vpack.c.bf16 %v540, %v539
        %v549 = vadd.bf16 %v437, %v541
        %v550 = vadd.bf16 %v438, %v542
        %v551 = vadd.bf16 %v439, %v543
        %v552 = vadd.bf16 %v440, %v544
        %v553 = vadd.bf16 %v441, %v545
        %v554 = vadd.bf16 %v442, %v546
        %v555 = vadd.bf16 %v443, %v547
        %v556 = vadd.bf16 %v444, %v548
        %557 = vset.pattern.permute.xlu0 2
        %558 = vperm.xlu0 %557, %v202
        %v559 = vpop.permute.xlu0 %558
        %560 = vset.pattern.permute.xlu0 2
        %561 = vperm.xlu0 %560, %v203
        %v562 = vpop.permute.xlu0 %561
        %563 = vset.pattern.permute.xlu0 2
        %564 = vperm.xlu0 %563, %v204
        %v565 = vpop.permute.xlu0 %564
        %566 = vset.pattern.permute.xlu0 2
        %567 = vperm.xlu0 %566, %v205
        %v568 = vpop.permute.xlu0 %567
        %569 = vset.pattern.permute.xlu0 2
        %570 = vperm.xlu0 %569, %v206
        %v571 = vpop.permute.xlu0 %570
        %572 = vset.pattern.permute.xlu0 2
        %573 = vperm.xlu0 %572, %v207
        %v574 = vpop.permute.xlu0 %573
        %575 = vset.pattern.permute.xlu0 2
        %576 = vperm.xlu0 %575, %v208
        %v577 = vpop.permute.xlu0 %576
        %578 = vset.pattern.permute.xlu0 2
        %579 = vperm.xlu0 %578, %v209
        %v580 = vpop.permute.xlu0 %579
        %581 = vset.pattern.permute.xlu0 2
        %582 = vperm.xlu0 %581, %v210
        %v583 = vpop.permute.xlu0 %582
        %584 = vset.pattern.permute.xlu0 2
        %585 = vperm.xlu0 %584, %v211
        %v586 = vpop.permute.xlu0 %585
        %587 = vset.pattern.permute.xlu0 2
        %588 = vperm.xlu0 %587, %v212
        %v589 = vpop.permute.xlu0 %588
        %590 = vset.pattern.permute.xlu0 2
        %591 = vperm.xlu0 %590, %v213
        %v592 = vpop.permute.xlu0 %591
        %593 = vset.pattern.permute.xlu0 2
        %594 = vperm.xlu0 %593, %v214
        %v595 = vpop.permute.xlu0 %594
        %596 = vset.pattern.permute.xlu0 2
        %597 = vperm.xlu0 %596, %v215
        %v598 = vpop.permute.xlu0 %597
        %599 = vset.pattern.permute.xlu0 2
        %600 = vperm.xlu0 %599, %v216
        %v601 = vpop.permute.xlu0 %600
        %602 = vset.pattern.permute.xlu0 2
        %603 = vperm.xlu0 %602, %v217
        %v604 = vpop.permute.xlu0 %603
        %vm605 = vcmp.eq.s32.totalorder %v559, %v332
        %vm606 = vcmp.eq.s32.totalorder %v562, %v332
        %vm607 = vcmp.eq.s32.totalorder %v565, %v332
        %vm608 = vcmp.eq.s32.totalorder %v568, %v332
        %vm609 = vcmp.eq.s32.totalorder %v571, %v332
        %vm610 = vcmp.eq.s32.totalorder %v574, %v332
        %vm611 = vcmp.eq.s32.totalorder %v577, %v332
        %vm612 = vcmp.eq.s32.totalorder %v580, %v332
        %vm613 = vcmp.eq.s32.totalorder %v583, %v332
        %vm614 = vcmp.eq.s32.totalorder %v586, %v332
        %vm615 = vcmp.eq.s32.totalorder %v589, %v332
        %vm616 = vcmp.eq.s32.totalorder %v592, %v332
        %vm617 = vcmp.eq.s32.totalorder %v595, %v332
        %vm618 = vcmp.eq.s32.totalorder %v598, %v332
        %vm619 = vcmp.eq.s32.totalorder %v601, %v332
        %vm620 = vcmp.eq.s32.totalorder %v604, %v332
        %v621 = vsel %vm605, 1, 0
        %v622 = vsel %vm606, 1, 0
        %v623 = vsel %vm607, 1, 0
        %v624 = vsel %vm608, 1, 0
        %v625 = vsel %vm609, 1, 0
        %v626 = vsel %vm610, 1, 0
        %v627 = vsel %vm611, 1, 0
        %v628 = vsel %vm612, 1, 0
        %v629 = vsel %vm613, 1, 0
        %v630 = vsel %vm614, 1, 0
        %v631 = vsel %vm615, 1, 0
        %v632 = vsel %vm616, 1, 0
        %v633 = vsel %vm617, 1, 0
        %v634 = vsel %vm618, 1, 0
        %v635 = vsel %vm619, 1, 0
        %v636 = vsel %vm620, 1, 0
        %v637 = vcvt.s32.f32 %v621
        %v638 = vcvt.s32.f32 %v622
        %v639 = vcvt.s32.f32 %v623
        %v640 = vcvt.s32.f32 %v624
        %v641 = vcvt.s32.f32 %v625
        %v642 = vcvt.s32.f32 %v626
        %v643 = vcvt.s32.f32 %v627
        %v644 = vcvt.s32.f32 %v628
        %v645 = vcvt.s32.f32 %v629
        %v646 = vcvt.s32.f32 %v630
        %v647 = vcvt.s32.f32 %v631
        %v648 = vcvt.s32.f32 %v632
        %v649 = vcvt.s32.f32 %v633
        %v650 = vcvt.s32.f32 %v634
        %v651 = vcvt.s32.f32 %v635
        %v652 = vcvt.s32.f32 %v636
        %v653 = vpack.c.bf16 %v638, %v637
        %v654 = vpack.c.bf16 %v640, %v639
        %v655 = vpack.c.bf16 %v642, %v641
        %v656 = vpack.c.bf16 %v644, %v643
        %v657 = vpack.c.bf16 %v646, %v645
        %v658 = vpack.c.bf16 %v648, %v647
        %v659 = vpack.c.bf16 %v650, %v649
        %v660 = vpack.c.bf16 %v652, %v651
        %v661 = vadd.bf16 %v549, %v653
        %v662 = vadd.bf16 %v550, %v654
        %v663 = vadd.bf16 %v551, %v655
        %v664 = vadd.bf16 %v552, %v656
        %v665 = vadd.bf16 %v553, %v657
        %v666 = vadd.bf16 %v554, %v658
        %v667 = vadd.bf16 %v555, %v659
        %v668 = vadd.bf16 %v556, %v660
        %669 = vset.pattern.permute.xlu0 3
        %670 = vperm.xlu0 %669, %v202
        %v671 = vpop.permute.xlu0 %670
        %672 = vset.pattern.permute.xlu0 3
        %673 = vperm.xlu0 %672, %v203
        %v674 = vpop.permute.xlu0 %673
        %675 = vset.pattern.permute.xlu0 3
        %676 = vperm.xlu0 %675, %v204
        %v677 = vpop.permute.xlu0 %676
        %678 = vset.pattern.permute.xlu0 3
        %679 = vperm.xlu0 %678, %v205
        %v680 = vpop.permute.xlu0 %679
        %681 = vset.pattern.permute.xlu0 3
        %682 = vperm.xlu0 %681, %v206
        %v683 = vpop.permute.xlu0 %682
        %684 = vset.pattern.permute.xlu0 3
        %685 = vperm.xlu0 %684, %v207
        %v686 = vpop.permute.xlu0 %685
        %687 = vset.pattern.permute.xlu0 3
        %688 = vperm.xlu0 %687, %v208
        %v689 = vpop.permute.xlu0 %688
        %690 = vset.pattern.permute.xlu0 3
        %691 = vperm.xlu0 %690, %v209
        %v692 = vpop.permute.xlu0 %691
        %693 = vset.pattern.permute.xlu0 3
        %694 = vperm.xlu0 %693, %v210
        %v695 = vpop.permute.xlu0 %694
        %696 = vset.pattern.permute.xlu0 3
        %697 = vperm.xlu0 %696, %v211
        %v698 = vpop.permute.xlu0 %697
        %699 = vset.pattern.permute.xlu0 3
        %700 = vperm.xlu0 %699, %v212
        %v701 = vpop.permute.xlu0 %700
        %702 = vset.pattern.permute.xlu0 3
        %703 = vperm.xlu0 %702, %v213
        %v704 = vpop.permute.xlu0 %703
        %705 = vset.pattern.permute.xlu0 3
        %706 = vperm.xlu0 %705, %v214
        %v707 = vpop.permute.xlu0 %706
        %708 = vset.pattern.permute.xlu0 3
        %709 = vperm.xlu0 %708, %v215
        %v710 = vpop.permute.xlu0 %709
        %711 = vset.pattern.permute.xlu0 3
        %712 = vperm.xlu0 %711, %v216
        %v713 = vpop.permute.xlu0 %712
        %714 = vset.pattern.permute.xlu0 3
        %715 = vperm.xlu0 %714, %v217
        %v716 = vpop.permute.xlu0 %715
        %vm717 = vcmp.eq.s32.totalorder %v671, %v332
        %vm718 = vcmp.eq.s32.totalorder %v674, %v332
        %vm719 = vcmp.eq.s32.totalorder %v677, %v332
        %vm720 = vcmp.eq.s32.totalorder %v680, %v332
        %vm721 = vcmp.eq.s32.totalorder %v683, %v332
        %vm722 = vcmp.eq.s32.totalorder %v686, %v332
        %vm723 = vcmp.eq.s32.totalorder %v689, %v332
        %vm724 = vcmp.eq.s32.totalorder %v692, %v332
        %vm725 = vcmp.eq.s32.totalorder %v695, %v332
        %vm726 = vcmp.eq.s32.totalorder %v698, %v332
        %vm727 = vcmp.eq.s32.totalorder %v701, %v332
        %vm728 = vcmp.eq.s32.totalorder %v704, %v332
        %vm729 = vcmp.eq.s32.totalorder %v707, %v332
        %vm730 = vcmp.eq.s32.totalorder %v710, %v332
        %vm731 = vcmp.eq.s32.totalorder %v713, %v332
        %vm732 = vcmp.eq.s32.totalorder %v716, %v332
        %v733 = vsel %vm717, 1, 0
        %v734 = vsel %vm718, 1, 0
        %v735 = vsel %vm719, 1, 0
        %v736 = vsel %vm720, 1, 0
        %v737 = vsel %vm721, 1, 0
        %v738 = vsel %vm722, 1, 0
        %v739 = vsel %vm723, 1, 0
        %v740 = vsel %vm724, 1, 0
        %v741 = vsel %vm725, 1, 0
        %v742 = vsel %vm726, 1, 0
        %v743 = vsel %vm727, 1, 0
        %v744 = vsel %vm728, 1, 0
        %v745 = vsel %vm729, 1, 0
        %v746 = vsel %vm730, 1, 0
        %v747 = vsel %vm731, 1, 0
        %v748 = vsel %vm732, 1, 0
        %v749 = vcvt.s32.f32 %v733
        %v750 = vcvt.s32.f32 %v734
        %v751 = vcvt.s32.f32 %v735
        %v752 = vcvt.s32.f32 %v736
        %v753 = vcvt.s32.f32 %v737
        %v754 = vcvt.s32.f32 %v738
        %v755 = vcvt.s32.f32 %v739
        %v756 = vcvt.s32.f32 %v740
        %v757 = vcvt.s32.f32 %v741
        %v758 = vcvt.s32.f32 %v742
        %v759 = vcvt.s32.f32 %v743
        %v760 = vcvt.s32.f32 %v744
        %v761 = vcvt.s32.f32 %v745
        %v762 = vcvt.s32.f32 %v746
        %v763 = vcvt.s32.f32 %v747
        %v764 = vcvt.s32.f32 %v748
        %v765 = vpack.c.bf16 %v750, %v749
        %v766 = vpack.c.bf16 %v752, %v751
        %v767 = vpack.c.bf16 %v754, %v753
        %v768 = vpack.c.bf16 %v756, %v755
        %v769 = vpack.c.bf16 %v758, %v757
        %v770 = vpack.c.bf16 %v760, %v759
        %v771 = vpack.c.bf16 %v762, %v761
        %v772 = vpack.c.bf16 %v764, %v763
        %v773 = vadd.bf16 %v661, %v765
        %v774 = vadd.bf16 %v662, %v766
        %v775 = vadd.bf16 %v663, %v767
        %v776 = vadd.bf16 %v664, %v768
        %v777 = vadd.bf16 %v665, %v769
        %v778 = vadd.bf16 %v666, %v770
        %v779 = vadd.bf16 %v667, %v771
        %v780 = vadd.bf16 %v668, %v772
        %781 = vset.pattern.permute.xlu0 4
        %782 = vperm.xlu0 %781, %v202
        %v783 = vpop.permute.xlu0 %782
        %784 = vset.pattern.permute.xlu0 4
        %785 = vperm.xlu0 %784, %v203
        %v786 = vpop.permute.xlu0 %785
        %787 = vset.pattern.permute.xlu0 4
        %788 = vperm.xlu0 %787, %v204
        %v789 = vpop.permute.xlu0 %788
        %790 = vset.pattern.permute.xlu0 4
        %791 = vperm.xlu0 %790, %v205
        %v792 = vpop.permute.xlu0 %791
        %793 = vset.pattern.permute.xlu0 4
        %794 = vperm.xlu0 %793, %v206
        %v795 = vpop.permute.xlu0 %794
        %796 = vset.pattern.permute.xlu0 4
        %797 = vperm.xlu0 %796, %v207
        %v798 = vpop.permute.xlu0 %797
        %799 = vset.pattern.permute.xlu0 4
        %800 = vperm.xlu0 %799, %v208
        %v801 = vpop.permute.xlu0 %800
        %802 = vset.pattern.permute.xlu0 4
        %803 = vperm.xlu0 %802, %v209
        %v804 = vpop.permute.xlu0 %803
        %805 = vset.pattern.permute.xlu0 4
        %806 = vperm.xlu0 %805, %v210
        %v807 = vpop.permute.xlu0 %806
        %808 = vset.pattern.permute.xlu0 4
        %809 = vperm.xlu0 %808, %v211
        %v810 = vpop.permute.xlu0 %809
        %811 = vset.pattern.permute.xlu0 4
        %812 = vperm.xlu0 %811, %v212
        %v813 = vpop.permute.xlu0 %812
        %814 = vset.pattern.permute.xlu0 4
        %815 = vperm.xlu0 %814, %v213
        %v816 = vpop.permute.xlu0 %815
        %817 = vset.pattern.permute.xlu0 4
        %818 = vperm.xlu0 %817, %v214
        %v819 = vpop.permute.xlu0 %818
        %820 = vset.pattern.permute.xlu0 4
        %821 = vperm.xlu0 %820, %v215
        %v822 = vpop.permute.xlu0 %821
        %823 = vset.pattern.permute.xlu0 4
        %824 = vperm.xlu0 %823, %v216
        %v825 = vpop.permute.xlu0 %824
        %826 = vset.pattern.permute.xlu0 4
        %827 = vperm.xlu0 %826, %v217
        %v828 = vpop.permute.xlu0 %827
        %vm829 = vcmp.eq.s32.totalorder %v783, %v332
        %vm830 = vcmp.eq.s32.totalorder %v786, %v332
        %vm831 = vcmp.eq.s32.totalorder %v789, %v332
        %vm832 = vcmp.eq.s32.totalorder %v792, %v332
        %vm833 = vcmp.eq.s32.totalorder %v795, %v332
        %vm834 = vcmp.eq.s32.totalorder %v798, %v332
        %vm835 = vcmp.eq.s32.totalorder %v801, %v332
        %vm836 = vcmp.eq.s32.totalorder %v804, %v332
        %vm837 = vcmp.eq.s32.totalorder %v807, %v332
        %vm838 = vcmp.eq.s32.totalorder %v810, %v332
        %vm839 = vcmp.eq.s32.totalorder %v813, %v332
        %vm840 = vcmp.eq.s32.totalorder %v816, %v332
        %vm841 = vcmp.eq.s32.totalorder %v819, %v332
        %vm842 = vcmp.eq.s32.totalorder %v822, %v332
        %vm843 = vcmp.eq.s32.totalorder %v825, %v332
        %vm844 = vcmp.eq.s32.totalorder %v828, %v332
        %v845 = vsel %vm829, 1, 0
        %v846 = vsel %vm830, 1, 0
        %v847 = vsel %vm831, 1, 0
        %v848 = vsel %vm832, 1, 0
        %v849 = vsel %vm833, 1, 0
        %v850 = vsel %vm834, 1, 0
        %v851 = vsel %vm835, 1, 0
        %v852 = vsel %vm836, 1, 0
        %v853 = vsel %vm837, 1, 0
        %v854 = vsel %vm838, 1, 0
        %v855 = vsel %vm839, 1, 0
        %v856 = vsel %vm840, 1, 0
        %v857 = vsel %vm841, 1, 0
        %v858 = vsel %vm842, 1, 0
        %v859 = vsel %vm843, 1, 0
        %v860 = vsel %vm844, 1, 0
        %v861 = vcvt.s32.f32 %v845
        %v862 = vcvt.s32.f32 %v846
        %v863 = vcvt.s32.f32 %v847
        %v864 = vcvt.s32.f32 %v848
        %v865 = vcvt.s32.f32 %v849
        %v866 = vcvt.s32.f32 %v850
        %v867 = vcvt.s32.f32 %v851
        %v868 = vcvt.s32.f32 %v852
        %v869 = vcvt.s32.f32 %v853
        %v870 = vcvt.s32.f32 %v854
        %v871 = vcvt.s32.f32 %v855
        %v872 = vcvt.s32.f32 %v856
        %v873 = vcvt.s32.f32 %v857
        %v874 = vcvt.s32.f32 %v858
        %v875 = vcvt.s32.f32 %v859
        %v876 = vcvt.s32.f32 %v860
        %v877 = vpack.c.bf16 %v862, %v861
        %v878 = vpack.c.bf16 %v864, %v863
        %v879 = vpack.c.bf16 %v866, %v865
        %v880 = vpack.c.bf16 %v868, %v867
        %v881 = vpack.c.bf16 %v870, %v869
        %v882 = vpack.c.bf16 %v872, %v871
        %v883 = vpack.c.bf16 %v874, %v873
        %v884 = vpack.c.bf16 %v876, %v875
        %v885 = vadd.bf16 %v773, %v877
        %v886 = vadd.bf16 %v774, %v878
        %v887 = vadd.bf16 %v775, %v879
        %v888 = vadd.bf16 %v776, %v880
        %v889 = vadd.bf16 %v777, %v881
        %v890 = vadd.bf16 %v778, %v882
        %v891 = vadd.bf16 %v779, %v883
        %v892 = vadd.bf16 %v780, %v884
        %893 = vset.pattern.permute.xlu0 5
        %894 = vperm.xlu0 %893, %v202
        %v895 = vpop.permute.xlu0 %894
        %896 = vset.pattern.permute.xlu0 5
        %897 = vperm.xlu0 %896, %v203
        %v898 = vpop.permute.xlu0 %897
        %899 = vset.pattern.permute.xlu0 5
        %900 = vperm.xlu0 %899, %v204
        %v901 = vpop.permute.xlu0 %900
        %902 = vset.pattern.permute.xlu0 5
        %903 = vperm.xlu0 %902, %v205
        %v904 = vpop.permute.xlu0 %903
        %905 = vset.pattern.permute.xlu0 5
        %906 = vperm.xlu0 %905, %v206
        %v907 = vpop.permute.xlu0 %906
        %908 = vset.pattern.permute.xlu0 5
        %909 = vperm.xlu0 %908, %v207
        %v910 = vpop.permute.xlu0 %909
        %911 = vset.pattern.permute.xlu0 5
        %912 = vperm.xlu0 %911, %v208
        %v913 = vpop.permute.xlu0 %912
        %914 = vset.pattern.permute.xlu0 5
        %915 = vperm.xlu0 %914, %v209
        %v916 = vpop.permute.xlu0 %915
        %917 = vset.pattern.permute.xlu0 5
        %918 = vperm.xlu0 %917, %v210
        %v919 = vpop.permute.xlu0 %918
        %920 = vset.pattern.permute.xlu0 5
        %921 = vperm.xlu0 %920, %v211
        %v922 = vpop.permute.xlu0 %921
        %923 = vset.pattern.permute.xlu0 5
        %924 = vperm.xlu0 %923, %v212
        %v925 = vpop.permute.xlu0 %924
        %926 = vset.pattern.permute.xlu0 5
        %927 = vperm.xlu0 %926, %v213
        %v928 = vpop.permute.xlu0 %927
        %929 = vset.pattern.permute.xlu0 5
        %930 = vperm.xlu0 %929, %v214
        %v931 = vpop.permute.xlu0 %930
        %932 = vset.pattern.permute.xlu0 5
        %933 = vperm.xlu0 %932, %v215
        %v934 = vpop.permute.xlu0 %933
        %935 = vset.pattern.permute.xlu0 5
        %936 = vperm.xlu0 %935, %v216
        %v937 = vpop.permute.xlu0 %936
        %938 = vset.pattern.permute.xlu0 5
        %939 = vperm.xlu0 %938, %v217
        %v940 = vpop.permute.xlu0 %939
        %vm941 = vcmp.eq.s32.totalorder %v895, %v332
        %vm942 = vcmp.eq.s32.totalorder %v898, %v332
        %vm943 = vcmp.eq.s32.totalorder %v901, %v332
        %vm944 = vcmp.eq.s32.totalorder %v904, %v332
        %vm945 = vcmp.eq.s32.totalorder %v907, %v332
        %vm946 = vcmp.eq.s32.totalorder %v910, %v332
        %vm947 = vcmp.eq.s32.totalorder %v913, %v332
        %vm948 = vcmp.eq.s32.totalorder %v916, %v332
        %vm949 = vcmp.eq.s32.totalorder %v919, %v332
        %vm950 = vcmp.eq.s32.totalorder %v922, %v332
        %vm951 = vcmp.eq.s32.totalorder %v925, %v332
        %vm952 = vcmp.eq.s32.totalorder %v928, %v332
        %vm953 = vcmp.eq.s32.totalorder %v931, %v332
        %vm954 = vcmp.eq.s32.totalorder %v934, %v332
        %vm955 = vcmp.eq.s32.totalorder %v937, %v332
        %vm956 = vcmp.eq.s32.totalorder %v940, %v332
        %v957 = vsel %vm941, 1, 0
        %v958 = vsel %vm942, 1, 0
        %v959 = vsel %vm943, 1, 0
        %v960 = vsel %vm944, 1, 0
        %v961 = vsel %vm945, 1, 0
        %v962 = vsel %vm946, 1, 0
        %v963 = vsel %vm947, 1, 0
        %v964 = vsel %vm948, 1, 0
        %v965 = vsel %vm949, 1, 0
        %v966 = vsel %vm950, 1, 0
        %v967 = vsel %vm951, 1, 0
        %v968 = vsel %vm952, 1, 0
        %v969 = vsel %vm953, 1, 0
        %v970 = vsel %vm954, 1, 0
        %v971 = vsel %vm955, 1, 0
        %v972 = vsel %vm956, 1, 0
        %v973 = vcvt.s32.f32 %v957
        %v974 = vcvt.s32.f32 %v958
        %v975 = vcvt.s32.f32 %v959
        %v976 = vcvt.s32.f32 %v960
        %v977 = vcvt.s32.f32 %v961
        %v978 = vcvt.s32.f32 %v962
        %v979 = vcvt.s32.f32 %v963
        %v980 = vcvt.s32.f32 %v964
        %v981 = vcvt.s32.f32 %v965
        %v982 = vcvt.s32.f32 %v966
        %v983 = vcvt.s32.f32 %v967
        %v984 = vcvt.s32.f32 %v968
        %v985 = vcvt.s32.f32 %v969
        %v986 = vcvt.s32.f32 %v970
        %v987 = vcvt.s32.f32 %v971
        %v988 = vcvt.s32.f32 %v972
        %v989 = vpack.c.bf16 %v974, %v973
        %v990 = vpack.c.bf16 %v976, %v975
        %v991 = vpack.c.bf16 %v978, %v977
        %v992 = vpack.c.bf16 %v980, %v979
        %v993 = vpack.c.bf16 %v982, %v981
        %v994 = vpack.c.bf16 %v984, %v983
        %v995 = vpack.c.bf16 %v986, %v985
        %v996 = vpack.c.bf16 %v988, %v987
        %v997 = vadd.bf16 %v885, %v989
        %v998 = vadd.bf16 %v886, %v990
        %v999 = vadd.bf16 %v887, %v991
        %v1000 = vadd.bf16 %v888, %v992
        %v1001 = vadd.bf16 %v889, %v993
        %v1002 = vadd.bf16 %v890, %v994
        %v1003 = vadd.bf16 %v891, %v995
        %v1004 = vadd.bf16 %v892, %v996
        %1005 = vset.pattern.permute.xlu0 6
        %1006 = vperm.xlu0 %1005, %v202
        %v1007 = vpop.permute.xlu0 %1006
        %1008 = vset.pattern.permute.xlu0 6
        %1009 = vperm.xlu0 %1008, %v203
        %v1010 = vpop.permute.xlu0 %1009
        %1011 = vset.pattern.permute.xlu0 6
        %1012 = vperm.xlu0 %1011, %v204
        %v1013 = vpop.permute.xlu0 %1012
        %1014 = vset.pattern.permute.xlu0 6
        %1015 = vperm.xlu0 %1014, %v205
        %v1016 = vpop.permute.xlu0 %1015
        %1017 = vset.pattern.permute.xlu0 6
        %1018 = vperm.xlu0 %1017, %v206
        %v1019 = vpop.permute.xlu0 %1018
        %1020 = vset.pattern.permute.xlu0 6
        %1021 = vperm.xlu0 %1020, %v207
        %v1022 = vpop.permute.xlu0 %1021
        %1023 = vset.pattern.permute.xlu0 6
        %1024 = vperm.xlu0 %1023, %v208
        %v1025 = vpop.permute.xlu0 %1024
        %1026 = vset.pattern.permute.xlu0 6
        %1027 = vperm.xlu0 %1026, %v209
        %v1028 = vpop.permute.xlu0 %1027
        %1029 = vset.pattern.permute.xlu0 6
        %1030 = vperm.xlu0 %1029, %v210
        %v1031 = vpop.permute.xlu0 %1030
        %1032 = vset.pattern.permute.xlu0 6
        %1033 = vperm.xlu0 %1032, %v211
        %v1034 = vpop.permute.xlu0 %1033
        %1035 = vset.pattern.permute.xlu0 6
        %1036 = vperm.xlu0 %1035, %v212
        %v1037 = vpop.permute.xlu0 %1036
        %1038 = vset.pattern.permute.xlu0 6
        %1039 = vperm.xlu0 %1038, %v213
        %v1040 = vpop.permute.xlu0 %1039
        %1041 = vset.pattern.permute.xlu0 6
        %1042 = vperm.xlu0 %1041, %v214
        %v1043 = vpop.permute.xlu0 %1042
        %1044 = vset.pattern.permute.xlu0 6
        %1045 = vperm.xlu0 %1044, %v215
        %v1046 = vpop.permute.xlu0 %1045
        %1047 = vset.pattern.permute.xlu0 6
        %1048 = vperm.xlu0 %1047, %v216
        %v1049 = vpop.permute.xlu0 %1048
        %1050 = vset.pattern.permute.xlu0 6
        %1051 = vperm.xlu0 %1050, %v217
        %v1052 = vpop.permute.xlu0 %1051
        %vm1053 = vcmp.eq.s32.totalorder %v1007, %v332
        %vm1054 = vcmp.eq.s32.totalorder %v1010, %v332
        %vm1055 = vcmp.eq.s32.totalorder %v1013, %v332
        %vm1056 = vcmp.eq.s32.totalorder %v1016, %v332
        %vm1057 = vcmp.eq.s32.totalorder %v1019, %v332
        %vm1058 = vcmp.eq.s32.totalorder %v1022, %v332
        %vm1059 = vcmp.eq.s32.totalorder %v1025, %v332
        %vm1060 = vcmp.eq.s32.totalorder %v1028, %v332
        %vm1061 = vcmp.eq.s32.totalorder %v1031, %v332
        %vm1062 = vcmp.eq.s32.totalorder %v1034, %v332
        %vm1063 = vcmp.eq.s32.totalorder %v1037, %v332
        %vm1064 = vcmp.eq.s32.totalorder %v1040, %v332
        %vm1065 = vcmp.eq.s32.totalorder %v1043, %v332
        %vm1066 = vcmp.eq.s32.totalorder %v1046, %v332
        %vm1067 = vcmp.eq.s32.totalorder %v1049, %v332
        %vm1068 = vcmp.eq.s32.totalorder %v1052, %v332
        %v1069 = vsel %vm1053, 1, 0
        %v1070 = vsel %vm1054, 1, 0
        %v1071 = vsel %vm1055, 1, 0
        %v1072 = vsel %vm1056, 1, 0
        %v1073 = vsel %vm1057, 1, 0
        %v1074 = vsel %vm1058, 1, 0
        %v1075 = vsel %vm1059, 1, 0
        %v1076 = vsel %vm1060, 1, 0
        %v1077 = vsel %vm1061, 1, 0
        %v1078 = vsel %vm1062, 1, 0
        %v1079 = vsel %vm1063, 1, 0
        %v1080 = vsel %vm1064, 1, 0
        %v1081 = vsel %vm1065, 1, 0
        %v1082 = vsel %vm1066, 1, 0
        %v1083 = vsel %vm1067, 1, 0
        %v1084 = vsel %vm1068, 1, 0
        %v1085 = vcvt.s32.f32 %v1069
        %v1086 = vcvt.s32.f32 %v1070
        %v1087 = vcvt.s32.f32 %v1071
        %v1088 = vcvt.s32.f32 %v1072
        %v1089 = vcvt.s32.f32 %v1073
        %v1090 = vcvt.s32.f32 %v1074
        %v1091 = vcvt.s32.f32 %v1075
        %v1092 = vcvt.s32.f32 %v1076
        %v1093 = vcvt.s32.f32 %v1077
        %v1094 = vcvt.s32.f32 %v1078
        %v1095 = vcvt.s32.f32 %v1079
        %v1096 = vcvt.s32.f32 %v1080
        %v1097 = vcvt.s32.f32 %v1081
        %v1098 = vcvt.s32.f32 %v1082
        %v1099 = vcvt.s32.f32 %v1083
        %v1100 = vcvt.s32.f32 %v1084
        %v1101 = vpack.c.bf16 %v1086, %v1085
        %v1102 = vpack.c.bf16 %v1088, %v1087
        %v1103 = vpack.c.bf16 %v1090, %v1089
        %v1104 = vpack.c.bf16 %v1092, %v1091
        %v1105 = vpack.c.bf16 %v1094, %v1093
        %v1106 = vpack.c.bf16 %v1096, %v1095
        %v1107 = vpack.c.bf16 %v1098, %v1097
        %v1108 = vpack.c.bf16 %v1100, %v1099
        %v1109 = vadd.bf16 %v997, %v1101
        %v1110 = vadd.bf16 %v998, %v1102
        %v1111 = vadd.bf16 %v999, %v1103
        %v1112 = vadd.bf16 %v1000, %v1104
        %v1113 = vadd.bf16 %v1001, %v1105
        %v1114 = vadd.bf16 %v1002, %v1106
        %v1115 = vadd.bf16 %v1003, %v1107
        %v1116 = vadd.bf16 %v1004, %v1108
        %1117 = vset.pattern.permute.xlu0 7
        %1118 = vperm.xlu0 %1117, %v202
        %v1119 = vpop.permute.xlu0 %1118
        %1120 = vset.pattern.permute.xlu0 7
        %1121 = vperm.xlu0 %1120, %v203
        %v1122 = vpop.permute.xlu0 %1121
        %1123 = vset.pattern.permute.xlu0 7
        %1124 = vperm.xlu0 %1123, %v204
        %v1125 = vpop.permute.xlu0 %1124
        %1126 = vset.pattern.permute.xlu0 7
        %1127 = vperm.xlu0 %1126, %v205
        %v1128 = vpop.permute.xlu0 %1127
        %1129 = vset.pattern.permute.xlu0 7
        %1130 = vperm.xlu0 %1129, %v206
        %v1131 = vpop.permute.xlu0 %1130
        %1132 = vset.pattern.permute.xlu0 7
        %1133 = vperm.xlu0 %1132, %v207
        %v1134 = vpop.permute.xlu0 %1133
        %1135 = vset.pattern.permute.xlu0 7
        %1136 = vperm.xlu0 %1135, %v208
        %v1137 = vpop.permute.xlu0 %1136
        %1138 = vset.pattern.permute.xlu0 7
        %1139 = vperm.xlu0 %1138, %v209
        %v1140 = vpop.permute.xlu0 %1139
        %1141 = vset.pattern.permute.xlu0 7
        %1142 = vperm.xlu0 %1141, %v210
        %v1143 = vpop.permute.xlu0 %1142
        %1144 = vset.pattern.permute.xlu0 7
        %1145 = vperm.xlu0 %1144, %v211
        %v1146 = vpop.permute.xlu0 %1145
        %1147 = vset.pattern.permute.xlu0 7
        %1148 = vperm.xlu0 %1147, %v212
        %v1149 = vpop.permute.xlu0 %1148
        %1150 = vset.pattern.permute.xlu0 7
        %1151 = vperm.xlu0 %1150, %v213
        %v1152 = vpop.permute.xlu0 %1151
        %1153 = vset.pattern.permute.xlu0 7
        %1154 = vperm.xlu0 %1153, %v214
        %v1155 = vpop.permute.xlu0 %1154
        %1156 = vset.pattern.permute.xlu0 7
        %1157 = vperm.xlu0 %1156, %v215
        %v1158 = vpop.permute.xlu0 %1157
        %1159 = vset.pattern.permute.xlu0 7
        %1160 = vperm.xlu0 %1159, %v216
        %v1161 = vpop.permute.xlu0 %1160
        %1162 = vset.pattern.permute.xlu0 7
        %1163 = vperm.xlu0 %1162, %v217
        %v1164 = vpop.permute.xlu0 %1163
        %vm1165 = vcmp.eq.s32.totalorder %v1119, %v332
        %vm1166 = vcmp.eq.s32.totalorder %v1122, %v332
        %vm1167 = vcmp.eq.s32.totalorder %v1125, %v332
        %vm1168 = vcmp.eq.s32.totalorder %v1128, %v332
        %vm1169 = vcmp.eq.s32.totalorder %v1131, %v332
        %vm1170 = vcmp.eq.s32.totalorder %v1134, %v332
        %vm1171 = vcmp.eq.s32.totalorder %v1137, %v332
        %vm1172 = vcmp.eq.s32.totalorder %v1140, %v332
        %vm1173 = vcmp.eq.s32.totalorder %v1143, %v332
        %vm1174 = vcmp.eq.s32.totalorder %v1146, %v332
        %vm1175 = vcmp.eq.s32.totalorder %v1149, %v332
        %vm1176 = vcmp.eq.s32.totalorder %v1152, %v332
        %vm1177 = vcmp.eq.s32.totalorder %v1155, %v332
        %vm1178 = vcmp.eq.s32.totalorder %v1158, %v332
        %vm1179 = vcmp.eq.s32.totalorder %v1161, %v332
        %vm1180 = vcmp.eq.s32.totalorder %v1164, %v332
        %v1181 = vsel %vm1165, 1, 0
        %v1182 = vsel %vm1166, 1, 0
        %v1183 = vsel %vm1167, 1, 0
        %v1184 = vsel %vm1168, 1, 0
        %v1185 = vsel %vm1169, 1, 0
        %v1186 = vsel %vm1170, 1, 0
        %v1187 = vsel %vm1171, 1, 0
        %v1188 = vsel %vm1172, 1, 0
        %v1189 = vsel %vm1173, 1, 0
        %v1190 = vsel %vm1174, 1, 0
        %v1191 = vsel %vm1175, 1, 0
        %v1192 = vsel %vm1176, 1, 0
        %v1193 = vsel %vm1177, 1, 0
        %v1194 = vsel %vm1178, 1, 0
        %v1195 = vsel %vm1179, 1, 0
        %v1196 = vsel %vm1180, 1, 0
        %v1197 = vcvt.s32.f32 %v1181
        %v1198 = vcvt.s32.f32 %v1182
        %v1199 = vcvt.s32.f32 %v1183
        %v1200 = vcvt.s32.f32 %v1184
        %v1201 = vcvt.s32.f32 %v1185
        %v1202 = vcvt.s32.f32 %v1186
        %v1203 = vcvt.s32.f32 %v1187
        %v1204 = vcvt.s32.f32 %v1188
        %v1205 = vcvt.s32.f32 %v1189
        %v1206 = vcvt.s32.f32 %v1190
        %v1207 = vcvt.s32.f32 %v1191
        %v1208 = vcvt.s32.f32 %v1192
        %v1209 = vcvt.s32.f32 %v1193
        %v1210 = vcvt.s32.f32 %v1194
        %v1211 = vcvt.s32.f32 %v1195
        %v1212 = vcvt.s32.f32 %v1196
        %v1213 = vpack.c.bf16 %v1198, %v1197
        %v1214 = vpack.c.bf16 %v1200, %v1199
        %v1215 = vpack.c.bf16 %v1202, %v1201
        %v1216 = vpack.c.bf16 %v1204, %v1203
        %v1217 = vpack.c.bf16 %v1206, %v1205
        %v1218 = vpack.c.bf16 %v1208, %v1207
        %v1219 = vpack.c.bf16 %v1210, %v1209
        %v1220 = vpack.c.bf16 %v1212, %v1211
        %v1221 = vadd.bf16 %v1109, %v1213
        %v1222 = vadd.bf16 %v1110, %v1214
        %v1223 = vadd.bf16 %v1111, %v1215
        %v1224 = vadd.bf16 %v1112, %v1216
        %v1225 = vadd.bf16 %v1113, %v1217
        %v1226 = vadd.bf16 %v1114, %v1218
        %v1227 = vadd.bf16 %v1115, %v1219
        %v1228 = vadd.bf16 %v1116, %v1220
        %1229 = vset.pattern.permute.xlu0 8
        %1230 = vperm.xlu0 %1229, %v202
        %v1231 = vpop.permute.xlu0 %1230
        %1232 = vset.pattern.permute.xlu0 8
        %1233 = vperm.xlu0 %1232, %v203
        %v1234 = vpop.permute.xlu0 %1233
        %1235 = vset.pattern.permute.xlu0 8
        %1236 = vperm.xlu0 %1235, %v204
        %v1237 = vpop.permute.xlu0 %1236
        %1238 = vset.pattern.permute.xlu0 8
        %1239 = vperm.xlu0 %1238, %v205
        %v1240 = vpop.permute.xlu0 %1239
        %1241 = vset.pattern.permute.xlu0 8
        %1242 = vperm.xlu0 %1241, %v206
        %v1243 = vpop.permute.xlu0 %1242
        %1244 = vset.pattern.permute.xlu0 8
        %1245 = vperm.xlu0 %1244, %v207
        %v1246 = vpop.permute.xlu0 %1245
        %1247 = vset.pattern.permute.xlu0 8
        %1248 = vperm.xlu0 %1247, %v208
        %v1249 = vpop.permute.xlu0 %1248
        %1250 = vset.pattern.permute.xlu0 8
        %1251 = vperm.xlu0 %1250, %v209
        %v1252 = vpop.permute.xlu0 %1251
        %1253 = vset.pattern.permute.xlu0 8
        %1254 = vperm.xlu0 %1253, %v210
        %v1255 = vpop.permute.xlu0 %1254
        %1256 = vset.pattern.permute.xlu0 8
        %1257 = vperm.xlu0 %1256, %v211
        %v1258 = vpop.permute.xlu0 %1257
        %1259 = vset.pattern.permute.xlu0 8
        %1260 = vperm.xlu0 %1259, %v212
        %v1261 = vpop.permute.xlu0 %1260
        %1262 = vset.pattern.permute.xlu0 8
        %1263 = vperm.xlu0 %1262, %v213
        %v1264 = vpop.permute.xlu0 %1263
        %1265 = vset.pattern.permute.xlu0 8
        %1266 = vperm.xlu0 %1265, %v214
        %v1267 = vpop.permute.xlu0 %1266
        %1268 = vset.pattern.permute.xlu0 8
        %1269 = vperm.xlu0 %1268, %v215
        %v1270 = vpop.permute.xlu0 %1269
        %1271 = vset.pattern.permute.xlu0 8
        %1272 = vperm.xlu0 %1271, %v216
        %v1273 = vpop.permute.xlu0 %1272
        %1274 = vset.pattern.permute.xlu0 8
        %1275 = vperm.xlu0 %1274, %v217
        %v1276 = vpop.permute.xlu0 %1275
        %vm1277 = vcmp.eq.s32.totalorder %v1231, %v332
        %vm1278 = vcmp.eq.s32.totalorder %v1234, %v332
        %vm1279 = vcmp.eq.s32.totalorder %v1237, %v332
        %vm1280 = vcmp.eq.s32.totalorder %v1240, %v332
        %vm1281 = vcmp.eq.s32.totalorder %v1243, %v332
        %vm1282 = vcmp.eq.s32.totalorder %v1246, %v332
        %vm1283 = vcmp.eq.s32.totalorder %v1249, %v332
        %vm1284 = vcmp.eq.s32.totalorder %v1252, %v332
        %vm1285 = vcmp.eq.s32.totalorder %v1255, %v332
        %vm1286 = vcmp.eq.s32.totalorder %v1258, %v332
        %vm1287 = vcmp.eq.s32.totalorder %v1261, %v332
        %vm1288 = vcmp.eq.s32.totalorder %v1264, %v332
        %vm1289 = vcmp.eq.s32.totalorder %v1267, %v332
        %vm1290 = vcmp.eq.s32.totalorder %v1270, %v332
        %vm1291 = vcmp.eq.s32.totalorder %v1273, %v332
        %vm1292 = vcmp.eq.s32.totalorder %v1276, %v332
        %v1293 = vsel %vm1277, 1, 0
        %v1294 = vsel %vm1278, 1, 0
        %v1295 = vsel %vm1279, 1, 0
        %v1296 = vsel %vm1280, 1, 0
        %v1297 = vsel %vm1281, 1, 0
        %v1298 = vsel %vm1282, 1, 0
        %v1299 = vsel %vm1283, 1, 0
        %v1300 = vsel %vm1284, 1, 0
        %v1301 = vsel %vm1285, 1, 0
        %v1302 = vsel %vm1286, 1, 0
        %v1303 = vsel %vm1287, 1, 0
        %v1304 = vsel %vm1288, 1, 0
        %v1305 = vsel %vm1289, 1, 0
        %v1306 = vsel %vm1290, 1, 0
        %v1307 = vsel %vm1291, 1, 0
        %v1308 = vsel %vm1292, 1, 0
        %v1309 = vcvt.s32.f32 %v1293
        %v1310 = vcvt.s32.f32 %v1294
        %v1311 = vcvt.s32.f32 %v1295
        %v1312 = vcvt.s32.f32 %v1296
        %v1313 = vcvt.s32.f32 %v1297
        %v1314 = vcvt.s32.f32 %v1298
        %v1315 = vcvt.s32.f32 %v1299
        %v1316 = vcvt.s32.f32 %v1300
        %v1317 = vcvt.s32.f32 %v1301
        %v1318 = vcvt.s32.f32 %v1302
        %v1319 = vcvt.s32.f32 %v1303
        %v1320 = vcvt.s32.f32 %v1304
        %v1321 = vcvt.s32.f32 %v1305
        %v1322 = vcvt.s32.f32 %v1306
        %v1323 = vcvt.s32.f32 %v1307
        %v1324 = vcvt.s32.f32 %v1308
        %v1325 = vpack.c.bf16 %v1310, %v1309
        %v1326 = vpack.c.bf16 %v1312, %v1311
        %v1327 = vpack.c.bf16 %v1314, %v1313
        %v1328 = vpack.c.bf16 %v1316, %v1315
        %v1329 = vpack.c.bf16 %v1318, %v1317
        %v1330 = vpack.c.bf16 %v1320, %v1319
        %v1331 = vpack.c.bf16 %v1322, %v1321
        %v1332 = vpack.c.bf16 %v1324, %v1323
        %v1333 = vadd.bf16 %v1221, %v1325
        %v1334 = vadd.bf16 %v1222, %v1326
        %v1335 = vadd.bf16 %v1223, %v1327
        %v1336 = vadd.bf16 %v1224, %v1328
        %v1337 = vadd.bf16 %v1225, %v1329
        %v1338 = vadd.bf16 %v1226, %v1330
        %v1339 = vadd.bf16 %v1227, %v1331
        %v1340 = vadd.bf16 %v1228, %v1332
        %1341 = vset.pattern.permute.xlu0 9
        %1342 = vperm.xlu0 %1341, %v202
        %v1343 = vpop.permute.xlu0 %1342
        %1344 = vset.pattern.permute.xlu0 9
        %1345 = vperm.xlu0 %1344, %v203
        %v1346 = vpop.permute.xlu0 %1345
        %1347 = vset.pattern.permute.xlu0 9
        %1348 = vperm.xlu0 %1347, %v204
        %v1349 = vpop.permute.xlu0 %1348
        %1350 = vset.pattern.permute.xlu0 9
        %1351 = vperm.xlu0 %1350, %v205
        %v1352 = vpop.permute.xlu0 %1351
        %1353 = vset.pattern.permute.xlu0 9
        %1354 = vperm.xlu0 %1353, %v206
        %v1355 = vpop.permute.xlu0 %1354
        %1356 = vset.pattern.permute.xlu0 9
        %1357 = vperm.xlu0 %1356, %v207
        %v1358 = vpop.permute.xlu0 %1357
        %1359 = vset.pattern.permute.xlu0 9
        %1360 = vperm.xlu0 %1359, %v208
        %v1361 = vpop.permute.xlu0 %1360
        %1362 = vset.pattern.permute.xlu0 9
        %1363 = vperm.xlu0 %1362, %v209
        %v1364 = vpop.permute.xlu0 %1363
        %1365 = vset.pattern.permute.xlu0 9
        %1366 = vperm.xlu0 %1365, %v210
        %v1367 = vpop.permute.xlu0 %1366
        %1368 = vset.pattern.permute.xlu0 9
        %1369 = vperm.xlu0 %1368, %v211
        %v1370 = vpop.permute.xlu0 %1369
        %1371 = vset.pattern.permute.xlu0 9
        %1372 = vperm.xlu0 %1371, %v212
        %v1373 = vpop.permute.xlu0 %1372
        %1374 = vset.pattern.permute.xlu0 9
        %1375 = vperm.xlu0 %1374, %v213
        %v1376 = vpop.permute.xlu0 %1375
        %1377 = vset.pattern.permute.xlu0 9
        %1378 = vperm.xlu0 %1377, %v214
        %v1379 = vpop.permute.xlu0 %1378
        %1380 = vset.pattern.permute.xlu0 9
        %1381 = vperm.xlu0 %1380, %v215
        %v1382 = vpop.permute.xlu0 %1381
        %1383 = vset.pattern.permute.xlu0 9
        %1384 = vperm.xlu0 %1383, %v216
        %v1385 = vpop.permute.xlu0 %1384
        %1386 = vset.pattern.permute.xlu0 9
        %1387 = vperm.xlu0 %1386, %v217
        %v1388 = vpop.permute.xlu0 %1387
        %vm1389 = vcmp.eq.s32.totalorder %v1343, %v332
        %vm1390 = vcmp.eq.s32.totalorder %v1346, %v332
        %vm1391 = vcmp.eq.s32.totalorder %v1349, %v332
        %vm1392 = vcmp.eq.s32.totalorder %v1352, %v332
        %vm1393 = vcmp.eq.s32.totalorder %v1355, %v332
        %vm1394 = vcmp.eq.s32.totalorder %v1358, %v332
        %vm1395 = vcmp.eq.s32.totalorder %v1361, %v332
        %vm1396 = vcmp.eq.s32.totalorder %v1364, %v332
        %vm1397 = vcmp.eq.s32.totalorder %v1367, %v332
        %vm1398 = vcmp.eq.s32.totalorder %v1370, %v332
        %vm1399 = vcmp.eq.s32.totalorder %v1373, %v332
        %vm1400 = vcmp.eq.s32.totalorder %v1376, %v332
        %vm1401 = vcmp.eq.s32.totalorder %v1379, %v332
        %vm1402 = vcmp.eq.s32.totalorder %v1382, %v332
        %vm1403 = vcmp.eq.s32.totalorder %v1385, %v332
        %vm1404 = vcmp.eq.s32.totalorder %v1388, %v332
        %v1405 = vsel %vm1389, 1, 0
        %v1406 = vsel %vm1390, 1, 0
        %v1407 = vsel %vm1391, 1, 0
        %v1408 = vsel %vm1392, 1, 0
        %v1409 = vsel %vm1393, 1, 0
        %v1410 = vsel %vm1394, 1, 0
        %v1411 = vsel %vm1395, 1, 0
        %v1412 = vsel %vm1396, 1, 0
        %v1413 = vsel %vm1397, 1, 0
        %v1414 = vsel %vm1398, 1, 0
        %v1415 = vsel %vm1399, 1, 0
        %v1416 = vsel %vm1400, 1, 0
        %v1417 = vsel %vm1401, 1, 0
        %v1418 = vsel %vm1402, 1, 0
        %v1419 = vsel %vm1403, 1, 0
        %v1420 = vsel %vm1404, 1, 0
        %v1421 = vcvt.s32.f32 %v1405
        %v1422 = vcvt.s32.f32 %v1406
        %v1423 = vcvt.s32.f32 %v1407
        %v1424 = vcvt.s32.f32 %v1408
        %v1425 = vcvt.s32.f32 %v1409
        %v1426 = vcvt.s32.f32 %v1410
        %v1427 = vcvt.s32.f32 %v1411
        %v1428 = vcvt.s32.f32 %v1412
        %v1429 = vcvt.s32.f32 %v1413
        %v1430 = vcvt.s32.f32 %v1414
        %v1431 = vcvt.s32.f32 %v1415
        %v1432 = vcvt.s32.f32 %v1416
        %v1433 = vcvt.s32.f32 %v1417
        %v1434 = vcvt.s32.f32 %v1418
        %v1435 = vcvt.s32.f32 %v1419
        %v1436 = vcvt.s32.f32 %v1420
        %v1437 = vpack.c.bf16 %v1422, %v1421
        %v1438 = vpack.c.bf16 %v1424, %v1423
        %v1439 = vpack.c.bf16 %v1426, %v1425
        %v1440 = vpack.c.bf16 %v1428, %v1427
        %v1441 = vpack.c.bf16 %v1430, %v1429
        %v1442 = vpack.c.bf16 %v1432, %v1431
        %v1443 = vpack.c.bf16 %v1434, %v1433
        %v1444 = vpack.c.bf16 %v1436, %v1435
        %v1445 = vadd.bf16 %v1333, %v1437
        %v1446 = vadd.bf16 %v1334, %v1438
        %v1447 = vadd.bf16 %v1335, %v1439
        %v1448 = vadd.bf16 %v1336, %v1440
        %v1449 = vadd.bf16 %v1337, %v1441
        %v1450 = vadd.bf16 %v1338, %v1442
        %v1451 = vadd.bf16 %v1339, %v1443
        %v1452 = vadd.bf16 %v1340, %v1444
        %1453 = vset.pattern.permute.xlu0 10
        %1454 = vperm.xlu0 %1453, %v202
        %v1455 = vpop.permute.xlu0 %1454
        %1456 = vset.pattern.permute.xlu0 10
        %1457 = vperm.xlu0 %1456, %v203
        %v1458 = vpop.permute.xlu0 %1457
        %1459 = vset.pattern.permute.xlu0 10
        %1460 = vperm.xlu0 %1459, %v204
        %v1461 = vpop.permute.xlu0 %1460
        %1462 = vset.pattern.permute.xlu0 10
        %1463 = vperm.xlu0 %1462, %v205
        %v1464 = vpop.permute.xlu0 %1463
        %1465 = vset.pattern.permute.xlu0 10
        %1466 = vperm.xlu0 %1465, %v206
        %v1467 = vpop.permute.xlu0 %1466
        %1468 = vset.pattern.permute.xlu0 10
        %1469 = vperm.xlu0 %1468, %v207
        %v1470 = vpop.permute.xlu0 %1469
        %1471 = vset.pattern.permute.xlu0 10
        %1472 = vperm.xlu0 %1471, %v208
        %v1473 = vpop.permute.xlu0 %1472
        %1474 = vset.pattern.permute.xlu0 10
        %1475 = vperm.xlu0 %1474, %v209
        %v1476 = vpop.permute.xlu0 %1475
        %1477 = vset.pattern.permute.xlu0 10
        %1478 = vperm.xlu0 %1477, %v210
        %v1479 = vpop.permute.xlu0 %1478
        %1480 = vset.pattern.permute.xlu0 10
        %1481 = vperm.xlu0 %1480, %v211
        %v1482 = vpop.permute.xlu0 %1481
        %1483 = vset.pattern.permute.xlu0 10
        %1484 = vperm.xlu0 %1483, %v212
        %v1485 = vpop.permute.xlu0 %1484
        %1486 = vset.pattern.permute.xlu0 10
        %1487 = vperm.xlu0 %1486, %v213
        %v1488 = vpop.permute.xlu0 %1487
        %1489 = vset.pattern.permute.xlu0 10
        %1490 = vperm.xlu0 %1489, %v214
        %v1491 = vpop.permute.xlu0 %1490
        %1492 = vset.pattern.permute.xlu0 10
        %1493 = vperm.xlu0 %1492, %v215
        %v1494 = vpop.permute.xlu0 %1493
        %1495 = vset.pattern.permute.xlu0 10
        %1496 = vperm.xlu0 %1495, %v216
        %v1497 = vpop.permute.xlu0 %1496
        %1498 = vset.pattern.permute.xlu0 10
        %1499 = vperm.xlu0 %1498, %v217
        %v1500 = vpop.permute.xlu0 %1499
        %vm1501 = vcmp.eq.s32.totalorder %v1455, %v332
        %vm1502 = vcmp.eq.s32.totalorder %v1458, %v332
        %vm1503 = vcmp.eq.s32.totalorder %v1461, %v332
        %vm1504 = vcmp.eq.s32.totalorder %v1464, %v332
        %vm1505 = vcmp.eq.s32.totalorder %v1467, %v332
        %vm1506 = vcmp.eq.s32.totalorder %v1470, %v332
        %vm1507 = vcmp.eq.s32.totalorder %v1473, %v332
        %vm1508 = vcmp.eq.s32.totalorder %v1476, %v332
        %vm1509 = vcmp.eq.s32.totalorder %v1479, %v332
        %vm1510 = vcmp.eq.s32.totalorder %v1482, %v332
        %vm1511 = vcmp.eq.s32.totalorder %v1485, %v332
        %vm1512 = vcmp.eq.s32.totalorder %v1488, %v332
        %vm1513 = vcmp.eq.s32.totalorder %v1491, %v332
        %vm1514 = vcmp.eq.s32.totalorder %v1494, %v332
        %vm1515 = vcmp.eq.s32.totalorder %v1497, %v332
        %vm1516 = vcmp.eq.s32.totalorder %v1500, %v332
        %v1517 = vsel %vm1501, 1, 0
        %v1518 = vsel %vm1502, 1, 0
        %v1519 = vsel %vm1503, 1, 0
        %v1520 = vsel %vm1504, 1, 0
        %v1521 = vsel %vm1505, 1, 0
        %v1522 = vsel %vm1506, 1, 0
        %v1523 = vsel %vm1507, 1, 0
        %v1524 = vsel %vm1508, 1, 0
        %v1525 = vsel %vm1509, 1, 0
        %v1526 = vsel %vm1510, 1, 0
        %v1527 = vsel %vm1511, 1, 0
        %v1528 = vsel %vm1512, 1, 0
        %v1529 = vsel %vm1513, 1, 0
        %v1530 = vsel %vm1514, 1, 0
        %v1531 = vsel %vm1515, 1, 0
        %v1532 = vsel %vm1516, 1, 0
        %v1533 = vcvt.s32.f32 %v1517
        %v1534 = vcvt.s32.f32 %v1518
        %v1535 = vcvt.s32.f32 %v1519
        %v1536 = vcvt.s32.f32 %v1520
        %v1537 = vcvt.s32.f32 %v1521
        %v1538 = vcvt.s32.f32 %v1522
        %v1539 = vcvt.s32.f32 %v1523
        %v1540 = vcvt.s32.f32 %v1524
        %v1541 = vcvt.s32.f32 %v1525
        %v1542 = vcvt.s32.f32 %v1526
        %v1543 = vcvt.s32.f32 %v1527
        %v1544 = vcvt.s32.f32 %v1528
        %v1545 = vcvt.s32.f32 %v1529
        %v1546 = vcvt.s32.f32 %v1530
        %v1547 = vcvt.s32.f32 %v1531
        %v1548 = vcvt.s32.f32 %v1532
        %v1549 = vpack.c.bf16 %v1534, %v1533
        %v1550 = vpack.c.bf16 %v1536, %v1535
        %v1551 = vpack.c.bf16 %v1538, %v1537
        %v1552 = vpack.c.bf16 %v1540, %v1539
        %v1553 = vpack.c.bf16 %v1542, %v1541
        %v1554 = vpack.c.bf16 %v1544, %v1543
        %v1555 = vpack.c.bf16 %v1546, %v1545
        %v1556 = vpack.c.bf16 %v1548, %v1547
        %v1557 = vadd.bf16 %v1445, %v1549
        %v1558 = vadd.bf16 %v1446, %v1550
        %v1559 = vadd.bf16 %v1447, %v1551
        %v1560 = vadd.bf16 %v1448, %v1552
        %v1561 = vadd.bf16 %v1449, %v1553
        %v1562 = vadd.bf16 %v1450, %v1554
        %v1563 = vadd.bf16 %v1451, %v1555
        %v1564 = vadd.bf16 %v1452, %v1556
        %1565 = vset.pattern.permute.xlu0 11
        %1566 = vperm.xlu0 %1565, %v202
        %v1567 = vpop.permute.xlu0 %1566
        %1568 = vset.pattern.permute.xlu0 11
        %1569 = vperm.xlu0 %1568, %v203
        %v1570 = vpop.permute.xlu0 %1569
        %1571 = vset.pattern.permute.xlu0 11
        %1572 = vperm.xlu0 %1571, %v204
        %v1573 = vpop.permute.xlu0 %1572
        %1574 = vset.pattern.permute.xlu0 11
        %1575 = vperm.xlu0 %1574, %v205
        %v1576 = vpop.permute.xlu0 %1575
        %1577 = vset.pattern.permute.xlu0 11
        %1578 = vperm.xlu0 %1577, %v206
        %v1579 = vpop.permute.xlu0 %1578
        %1580 = vset.pattern.permute.xlu0 11
        %1581 = vperm.xlu0 %1580, %v207
        %v1582 = vpop.permute.xlu0 %1581
        %1583 = vset.pattern.permute.xlu0 11
        %1584 = vperm.xlu0 %1583, %v208
        %v1585 = vpop.permute.xlu0 %1584
        %1586 = vset.pattern.permute.xlu0 11
        %1587 = vperm.xlu0 %1586, %v209
        %v1588 = vpop.permute.xlu0 %1587
        %1589 = vset.pattern.permute.xlu0 11
        %1590 = vperm.xlu0 %1589, %v210
        %v1591 = vpop.permute.xlu0 %1590
        %1592 = vset.pattern.permute.xlu0 11
        %1593 = vperm.xlu0 %1592, %v211
        %v1594 = vpop.permute.xlu0 %1593
        %1595 = vset.pattern.permute.xlu0 11
        %1596 = vperm.xlu0 %1595, %v212
        %v1597 = vpop.permute.xlu0 %1596
        %1598 = vset.pattern.permute.xlu0 11
        %1599 = vperm.xlu0 %1598, %v213
        %v1600 = vpop.permute.xlu0 %1599
        %1601 = vset.pattern.permute.xlu0 11
        %1602 = vperm.xlu0 %1601, %v214
        %v1603 = vpop.permute.xlu0 %1602
        %1604 = vset.pattern.permute.xlu0 11
        %1605 = vperm.xlu0 %1604, %v215
        %v1606 = vpop.permute.xlu0 %1605
        %1607 = vset.pattern.permute.xlu0 11
        %1608 = vperm.xlu0 %1607, %v216
        %v1609 = vpop.permute.xlu0 %1608
        %1610 = vset.pattern.permute.xlu0 11
        %1611 = vperm.xlu0 %1610, %v217
        %v1612 = vpop.permute.xlu0 %1611
        %vm1613 = vcmp.eq.s32.totalorder %v1567, %v332
        %vm1614 = vcmp.eq.s32.totalorder %v1570, %v332
        %vm1615 = vcmp.eq.s32.totalorder %v1573, %v332
        %vm1616 = vcmp.eq.s32.totalorder %v1576, %v332
        %vm1617 = vcmp.eq.s32.totalorder %v1579, %v332
        %vm1618 = vcmp.eq.s32.totalorder %v1582, %v332
        %vm1619 = vcmp.eq.s32.totalorder %v1585, %v332
        %vm1620 = vcmp.eq.s32.totalorder %v1588, %v332
        %vm1621 = vcmp.eq.s32.totalorder %v1591, %v332
        %vm1622 = vcmp.eq.s32.totalorder %v1594, %v332
        %vm1623 = vcmp.eq.s32.totalorder %v1597, %v332
        %vm1624 = vcmp.eq.s32.totalorder %v1600, %v332
        %vm1625 = vcmp.eq.s32.totalorder %v1603, %v332
        %vm1626 = vcmp.eq.s32.totalorder %v1606, %v332
        %vm1627 = vcmp.eq.s32.totalorder %v1609, %v332
        %vm1628 = vcmp.eq.s32.totalorder %v1612, %v332
        %v1629 = vsel %vm1613, 1, 0
        %v1630 = vsel %vm1614, 1, 0
        %v1631 = vsel %vm1615, 1, 0
        %v1632 = vsel %vm1616, 1, 0
        %v1633 = vsel %vm1617, 1, 0
        %v1634 = vsel %vm1618, 1, 0
        %v1635 = vsel %vm1619, 1, 0
        %v1636 = vsel %vm1620, 1, 0
        %v1637 = vsel %vm1621, 1, 0
        %v1638 = vsel %vm1622, 1, 0
        %v1639 = vsel %vm1623, 1, 0
        %v1640 = vsel %vm1624, 1, 0
        %v1641 = vsel %vm1625, 1, 0
        %v1642 = vsel %vm1626, 1, 0
        %v1643 = vsel %vm1627, 1, 0
        %v1644 = vsel %vm1628, 1, 0
        %v1645 = vcvt.s32.f32 %v1629
        %v1646 = vcvt.s32.f32 %v1630
        %v1647 = vcvt.s32.f32 %v1631
        %v1648 = vcvt.s32.f32 %v1632
        %v1649 = vcvt.s32.f32 %v1633
        %v1650 = vcvt.s32.f32 %v1634
        %v1651 = vcvt.s32.f32 %v1635
        %v1652 = vcvt.s32.f32 %v1636
        %v1653 = vcvt.s32.f32 %v1637
        %v1654 = vcvt.s32.f32 %v1638
        %v1655 = vcvt.s32.f32 %v1639
        %v1656 = vcvt.s32.f32 %v1640
        %v1657 = vcvt.s32.f32 %v1641
        %v1658 = vcvt.s32.f32 %v1642
        %v1659 = vcvt.s32.f32 %v1643
        %v1660 = vcvt.s32.f32 %v1644
        %v1661 = vpack.c.bf16 %v1646, %v1645
        %v1662 = vpack.c.bf16 %v1648, %v1647
        %v1663 = vpack.c.bf16 %v1650, %v1649
        %v1664 = vpack.c.bf16 %v1652, %v1651
        %v1665 = vpack.c.bf16 %v1654, %v1653
        %v1666 = vpack.c.bf16 %v1656, %v1655
        %v1667 = vpack.c.bf16 %v1658, %v1657
        %v1668 = vpack.c.bf16 %v1660, %v1659
        %v1669 = vadd.bf16 %v1557, %v1661
        %v1670 = vadd.bf16 %v1558, %v1662
        %v1671 = vadd.bf16 %v1559, %v1663
        %v1672 = vadd.bf16 %v1560, %v1664
        %v1673 = vadd.bf16 %v1561, %v1665
        %v1674 = vadd.bf16 %v1562, %v1666
        %v1675 = vadd.bf16 %v1563, %v1667
        %v1676 = vadd.bf16 %v1564, %v1668
        %1677 = vset.pattern.permute.xlu0 12
        %1678 = vperm.xlu0 %1677, %v202
        %v1679 = vpop.permute.xlu0 %1678
        %1680 = vset.pattern.permute.xlu0 12
        %1681 = vperm.xlu0 %1680, %v203
        %v1682 = vpop.permute.xlu0 %1681
        %1683 = vset.pattern.permute.xlu0 12
        %1684 = vperm.xlu0 %1683, %v204
        %v1685 = vpop.permute.xlu0 %1684
        %1686 = vset.pattern.permute.xlu0 12
        %1687 = vperm.xlu0 %1686, %v205
        %v1688 = vpop.permute.xlu0 %1687
        %1689 = vset.pattern.permute.xlu0 12
        %1690 = vperm.xlu0 %1689, %v206
        %v1691 = vpop.permute.xlu0 %1690
        %1692 = vset.pattern.permute.xlu0 12
        %1693 = vperm.xlu0 %1692, %v207
        %v1694 = vpop.permute.xlu0 %1693
        %1695 = vset.pattern.permute.xlu0 12
        %1696 = vperm.xlu0 %1695, %v208
        %v1697 = vpop.permute.xlu0 %1696
        %1698 = vset.pattern.permute.xlu0 12
        %1699 = vperm.xlu0 %1698, %v209
        %v1700 = vpop.permute.xlu0 %1699
        %1701 = vset.pattern.permute.xlu0 12
        %1702 = vperm.xlu0 %1701, %v210
        %v1703 = vpop.permute.xlu0 %1702
        %1704 = vset.pattern.permute.xlu0 12
        %1705 = vperm.xlu0 %1704, %v211
        %v1706 = vpop.permute.xlu0 %1705
        %1707 = vset.pattern.permute.xlu0 12
        %1708 = vperm.xlu0 %1707, %v212
        %v1709 = vpop.permute.xlu0 %1708
        %1710 = vset.pattern.permute.xlu0 12
        %1711 = vperm.xlu0 %1710, %v213
        %v1712 = vpop.permute.xlu0 %1711
        %1713 = vset.pattern.permute.xlu0 12
        %1714 = vperm.xlu0 %1713, %v214
        %v1715 = vpop.permute.xlu0 %1714
        %1716 = vset.pattern.permute.xlu0 12
        %1717 = vperm.xlu0 %1716, %v215
        %v1718 = vpop.permute.xlu0 %1717
        %1719 = vset.pattern.permute.xlu0 12
        %1720 = vperm.xlu0 %1719, %v216
        %v1721 = vpop.permute.xlu0 %1720
        %1722 = vset.pattern.permute.xlu0 12
        %1723 = vperm.xlu0 %1722, %v217
        %v1724 = vpop.permute.xlu0 %1723
        %vm1725 = vcmp.eq.s32.totalorder %v1679, %v332
        %vm1726 = vcmp.eq.s32.totalorder %v1682, %v332
        %vm1727 = vcmp.eq.s32.totalorder %v1685, %v332
        %vm1728 = vcmp.eq.s32.totalorder %v1688, %v332
        %vm1729 = vcmp.eq.s32.totalorder %v1691, %v332
        %vm1730 = vcmp.eq.s32.totalorder %v1694, %v332
        %vm1731 = vcmp.eq.s32.totalorder %v1697, %v332
        %vm1732 = vcmp.eq.s32.totalorder %v1700, %v332
        %vm1733 = vcmp.eq.s32.totalorder %v1703, %v332
        %vm1734 = vcmp.eq.s32.totalorder %v1706, %v332
        %vm1735 = vcmp.eq.s32.totalorder %v1709, %v332
        %vm1736 = vcmp.eq.s32.totalorder %v1712, %v332
        %vm1737 = vcmp.eq.s32.totalorder %v1715, %v332
        %vm1738 = vcmp.eq.s32.totalorder %v1718, %v332
        %vm1739 = vcmp.eq.s32.totalorder %v1721, %v332
        %vm1740 = vcmp.eq.s32.totalorder %v1724, %v332
        %v1741 = vsel %vm1725, 1, 0
        %v1742 = vsel %vm1726, 1, 0
        %v1743 = vsel %vm1727, 1, 0
        %v1744 = vsel %vm1728, 1, 0
        %v1745 = vsel %vm1729, 1, 0
        %v1746 = vsel %vm1730, 1, 0
        %v1747 = vsel %vm1731, 1, 0
        %v1748 = vsel %vm1732, 1, 0
        %v1749 = vsel %vm1733, 1, 0
        %v1750 = vsel %vm1734, 1, 0
        %v1751 = vsel %vm1735, 1, 0
        %v1752 = vsel %vm1736, 1, 0
        %v1753 = vsel %vm1737, 1, 0
        %v1754 = vsel %vm1738, 1, 0
        %v1755 = vsel %vm1739, 1, 0
        %v1756 = vsel %vm1740, 1, 0
        %v1757 = vcvt.s32.f32 %v1741
        %v1758 = vcvt.s32.f32 %v1742
        %v1759 = vcvt.s32.f32 %v1743
        %v1760 = vcvt.s32.f32 %v1744
        %v1761 = vcvt.s32.f32 %v1745
        %v1762 = vcvt.s32.f32 %v1746
        %v1763 = vcvt.s32.f32 %v1747
        %v1764 = vcvt.s32.f32 %v1748
        %v1765 = vcvt.s32.f32 %v1749
        %v1766 = vcvt.s32.f32 %v1750
        %v1767 = vcvt.s32.f32 %v1751
        %v1768 = vcvt.s32.f32 %v1752
        %v1769 = vcvt.s32.f32 %v1753
        %v1770 = vcvt.s32.f32 %v1754
        %v1771 = vcvt.s32.f32 %v1755
        %v1772 = vcvt.s32.f32 %v1756
        %v1773 = vpack.c.bf16 %v1758, %v1757
        %v1774 = vpack.c.bf16 %v1760, %v1759
        %v1775 = vpack.c.bf16 %v1762, %v1761
        %v1776 = vpack.c.bf16 %v1764, %v1763
        %v1777 = vpack.c.bf16 %v1766, %v1765
        %v1778 = vpack.c.bf16 %v1768, %v1767
        %v1779 = vpack.c.bf16 %v1770, %v1769
        %v1780 = vpack.c.bf16 %v1772, %v1771
        %v1781 = vadd.bf16 %v1669, %v1773
        %v1782 = vadd.bf16 %v1670, %v1774
        %v1783 = vadd.bf16 %v1671, %v1775
        %v1784 = vadd.bf16 %v1672, %v1776
        %v1785 = vadd.bf16 %v1673, %v1777
        %v1786 = vadd.bf16 %v1674, %v1778
        %v1787 = vadd.bf16 %v1675, %v1779
        %v1788 = vadd.bf16 %v1676, %v1780
        %1789 = vset.pattern.permute.xlu0 13
        %1790 = vperm.xlu0 %1789, %v202
        %v1791 = vpop.permute.xlu0 %1790
        %1792 = vset.pattern.permute.xlu0 13
        %1793 = vperm.xlu0 %1792, %v203
        %v1794 = vpop.permute.xlu0 %1793
        %1795 = vset.pattern.permute.xlu0 13
        %1796 = vperm.xlu0 %1795, %v204
        %v1797 = vpop.permute.xlu0 %1796
        %1798 = vset.pattern.permute.xlu0 13
        %1799 = vperm.xlu0 %1798, %v205
        %v1800 = vpop.permute.xlu0 %1799
        %1801 = vset.pattern.permute.xlu0 13
        %1802 = vperm.xlu0 %1801, %v206
        %v1803 = vpop.permute.xlu0 %1802
        %1804 = vset.pattern.permute.xlu0 13
        %1805 = vperm.xlu0 %1804, %v207
        %v1806 = vpop.permute.xlu0 %1805
        %1807 = vset.pattern.permute.xlu0 13
        %1808 = vperm.xlu0 %1807, %v208
        %v1809 = vpop.permute.xlu0 %1808
        %1810 = vset.pattern.permute.xlu0 13
        %1811 = vperm.xlu0 %1810, %v209
        %v1812 = vpop.permute.xlu0 %1811
        %1813 = vset.pattern.permute.xlu0 13
        %1814 = vperm.xlu0 %1813, %v210
        %v1815 = vpop.permute.xlu0 %1814
        %1816 = vset.pattern.permute.xlu0 13
        %1817 = vperm.xlu0 %1816, %v211
        %v1818 = vpop.permute.xlu0 %1817
        %1819 = vset.pattern.permute.xlu0 13
        %1820 = vperm.xlu0 %1819, %v212
        %v1821 = vpop.permute.xlu0 %1820
        %1822 = vset.pattern.permute.xlu0 13
        %1823 = vperm.xlu0 %1822, %v213
        %v1824 = vpop.permute.xlu0 %1823
        %1825 = vset.pattern.permute.xlu0 13
        %1826 = vperm.xlu0 %1825, %v214
        %v1827 = vpop.permute.xlu0 %1826
        %1828 = vset.pattern.permute.xlu0 13
        %1829 = vperm.xlu0 %1828, %v215
        %v1830 = vpop.permute.xlu0 %1829
        %1831 = vset.pattern.permute.xlu0 13
        %1832 = vperm.xlu0 %1831, %v216
        %v1833 = vpop.permute.xlu0 %1832
        %1834 = vset.pattern.permute.xlu0 13
        %1835 = vperm.xlu0 %1834, %v217
        %v1836 = vpop.permute.xlu0 %1835
        %vm1837 = vcmp.eq.s32.totalorder %v1791, %v332
        %vm1838 = vcmp.eq.s32.totalorder %v1794, %v332
        %vm1839 = vcmp.eq.s32.totalorder %v1797, %v332
        %vm1840 = vcmp.eq.s32.totalorder %v1800, %v332
        %vm1841 = vcmp.eq.s32.totalorder %v1803, %v332
        %vm1842 = vcmp.eq.s32.totalorder %v1806, %v332
        %vm1843 = vcmp.eq.s32.totalorder %v1809, %v332
        %vm1844 = vcmp.eq.s32.totalorder %v1812, %v332
        %vm1845 = vcmp.eq.s32.totalorder %v1815, %v332
        %vm1846 = vcmp.eq.s32.totalorder %v1818, %v332
        %vm1847 = vcmp.eq.s32.totalorder %v1821, %v332
        %vm1848 = vcmp.eq.s32.totalorder %v1824, %v332
        %vm1849 = vcmp.eq.s32.totalorder %v1827, %v332
        %vm1850 = vcmp.eq.s32.totalorder %v1830, %v332
        %vm1851 = vcmp.eq.s32.totalorder %v1833, %v332
        %vm1852 = vcmp.eq.s32.totalorder %v1836, %v332
        %v1853 = vsel %vm1837, 1, 0
        %v1854 = vsel %vm1838, 1, 0
        %v1855 = vsel %vm1839, 1, 0
        %v1856 = vsel %vm1840, 1, 0
        %v1857 = vsel %vm1841, 1, 0
        %v1858 = vsel %vm1842, 1, 0
        %v1859 = vsel %vm1843, 1, 0
        %v1860 = vsel %vm1844, 1, 0
        %v1861 = vsel %vm1845, 1, 0
        %v1862 = vsel %vm1846, 1, 0
        %v1863 = vsel %vm1847, 1, 0
        %v1864 = vsel %vm1848, 1, 0
        %v1865 = vsel %vm1849, 1, 0
        %v1866 = vsel %vm1850, 1, 0
        %v1867 = vsel %vm1851, 1, 0
        %v1868 = vsel %vm1852, 1, 0
        %v1869 = vcvt.s32.f32 %v1853
        %v1870 = vcvt.s32.f32 %v1854
        %v1871 = vcvt.s32.f32 %v1855
        %v1872 = vcvt.s32.f32 %v1856
        %v1873 = vcvt.s32.f32 %v1857
        %v1874 = vcvt.s32.f32 %v1858
        %v1875 = vcvt.s32.f32 %v1859
        %v1876 = vcvt.s32.f32 %v1860
        %v1877 = vcvt.s32.f32 %v1861
        %v1878 = vcvt.s32.f32 %v1862
        %v1879 = vcvt.s32.f32 %v1863
        %v1880 = vcvt.s32.f32 %v1864
        %v1881 = vcvt.s32.f32 %v1865
        %v1882 = vcvt.s32.f32 %v1866
        %v1883 = vcvt.s32.f32 %v1867
        %v1884 = vcvt.s32.f32 %v1868
        %v1885 = vpack.c.bf16 %v1870, %v1869
        %v1886 = vpack.c.bf16 %v1872, %v1871
        %v1887 = vpack.c.bf16 %v1874, %v1873
        %v1888 = vpack.c.bf16 %v1876, %v1875
        %v1889 = vpack.c.bf16 %v1878, %v1877
        %v1890 = vpack.c.bf16 %v1880, %v1879
        %v1891 = vpack.c.bf16 %v1882, %v1881
        %v1892 = vpack.c.bf16 %v1884, %v1883
        %v1893 = vadd.bf16 %v1781, %v1885
        %v1894 = vadd.bf16 %v1782, %v1886
        %v1895 = vadd.bf16 %v1783, %v1887
        %v1896 = vadd.bf16 %v1784, %v1888
        %v1897 = vadd.bf16 %v1785, %v1889
        %v1898 = vadd.bf16 %v1786, %v1890
        %v1899 = vadd.bf16 %v1787, %v1891
        %v1900 = vadd.bf16 %v1788, %v1892
        %1901 = vset.pattern.permute.xlu0 14
        %1902 = vperm.xlu0 %1901, %v202
        %v1903 = vpop.permute.xlu0 %1902
        %1904 = vset.pattern.permute.xlu0 14
        %1905 = vperm.xlu0 %1904, %v203
        %v1906 = vpop.permute.xlu0 %1905
        %1907 = vset.pattern.permute.xlu0 14
        %1908 = vperm.xlu0 %1907, %v204
        %v1909 = vpop.permute.xlu0 %1908
        %1910 = vset.pattern.permute.xlu0 14
        %1911 = vperm.xlu0 %1910, %v205
        %v1912 = vpop.permute.xlu0 %1911
        %1913 = vset.pattern.permute.xlu0 14
        %1914 = vperm.xlu0 %1913, %v206
        %v1915 = vpop.permute.xlu0 %1914
        %1916 = vset.pattern.permute.xlu0 14
        %1917 = vperm.xlu0 %1916, %v207
        %v1918 = vpop.permute.xlu0 %1917
        %1919 = vset.pattern.permute.xlu0 14
        %1920 = vperm.xlu0 %1919, %v208
        %v1921 = vpop.permute.xlu0 %1920
        %1922 = vset.pattern.permute.xlu0 14
        %1923 = vperm.xlu0 %1922, %v209
        %v1924 = vpop.permute.xlu0 %1923
        %1925 = vset.pattern.permute.xlu0 14
        %1926 = vperm.xlu0 %1925, %v210
        %v1927 = vpop.permute.xlu0 %1926
        %1928 = vset.pattern.permute.xlu0 14
        %1929 = vperm.xlu0 %1928, %v211
        %v1930 = vpop.permute.xlu0 %1929
        %1931 = vset.pattern.permute.xlu0 14
        %1932 = vperm.xlu0 %1931, %v212
        %v1933 = vpop.permute.xlu0 %1932
        %1934 = vset.pattern.permute.xlu0 14
        %1935 = vperm.xlu0 %1934, %v213
        %v1936 = vpop.permute.xlu0 %1935
        %1937 = vset.pattern.permute.xlu0 14
        %1938 = vperm.xlu0 %1937, %v214
        %v1939 = vpop.permute.xlu0 %1938
        %1940 = vset.pattern.permute.xlu0 14
        %1941 = vperm.xlu0 %1940, %v215
        %v1942 = vpop.permute.xlu0 %1941
        %1943 = vset.pattern.permute.xlu0 14
        %1944 = vperm.xlu0 %1943, %v216
        %v1945 = vpop.permute.xlu0 %1944
        %1946 = vset.pattern.permute.xlu0 14
        %1947 = vperm.xlu0 %1946, %v217
        %v1948 = vpop.permute.xlu0 %1947
        %vm1949 = vcmp.eq.s32.totalorder %v1903, %v332
        %vm1950 = vcmp.eq.s32.totalorder %v1906, %v332
        %vm1951 = vcmp.eq.s32.totalorder %v1909, %v332
        %vm1952 = vcmp.eq.s32.totalorder %v1912, %v332
        %vm1953 = vcmp.eq.s32.totalorder %v1915, %v332
        %vm1954 = vcmp.eq.s32.totalorder %v1918, %v332
        %vm1955 = vcmp.eq.s32.totalorder %v1921, %v332
        %vm1956 = vcmp.eq.s32.totalorder %v1924, %v332
        %vm1957 = vcmp.eq.s32.totalorder %v1927, %v332
        %vm1958 = vcmp.eq.s32.totalorder %v1930, %v332
        %vm1959 = vcmp.eq.s32.totalorder %v1933, %v332
        %vm1960 = vcmp.eq.s32.totalorder %v1936, %v332
        %vm1961 = vcmp.eq.s32.totalorder %v1939, %v332
        %vm1962 = vcmp.eq.s32.totalorder %v1942, %v332
        %vm1963 = vcmp.eq.s32.totalorder %v1945, %v332
        %vm1964 = vcmp.eq.s32.totalorder %v1948, %v332
        %v1965 = vsel %vm1949, 1, 0
        %v1966 = vsel %vm1950, 1, 0
        %v1967 = vsel %vm1951, 1, 0
        %v1968 = vsel %vm1952, 1, 0
        %v1969 = vsel %vm1953, 1, 0
        %v1970 = vsel %vm1954, 1, 0
        %v1971 = vsel %vm1955, 1, 0
        %v1972 = vsel %vm1956, 1, 0
        %v1973 = vsel %vm1957, 1, 0
        %v1974 = vsel %vm1958, 1, 0
        %v1975 = vsel %vm1959, 1, 0
        %v1976 = vsel %vm1960, 1, 0
        %v1977 = vsel %vm1961, 1, 0
        %v1978 = vsel %vm1962, 1, 0
        %v1979 = vsel %vm1963, 1, 0
        %v1980 = vsel %vm1964, 1, 0
        %v1981 = vcvt.s32.f32 %v1965
        %v1982 = vcvt.s32.f32 %v1966
        %v1983 = vcvt.s32.f32 %v1967
        %v1984 = vcvt.s32.f32 %v1968
        %v1985 = vcvt.s32.f32 %v1969
        %v1986 = vcvt.s32.f32 %v1970
        %v1987 = vcvt.s32.f32 %v1971
        %v1988 = vcvt.s32.f32 %v1972
        %v1989 = vcvt.s32.f32 %v1973
        %v1990 = vcvt.s32.f32 %v1974
        %v1991 = vcvt.s32.f32 %v1975
        %v1992 = vcvt.s32.f32 %v1976
        %v1993 = vcvt.s32.f32 %v1977
        %v1994 = vcvt.s32.f32 %v1978
        %v1995 = vcvt.s32.f32 %v1979
        %v1996 = vcvt.s32.f32 %v1980
        %v1997 = vpack.c.bf16 %v1982, %v1981
        %v1998 = vpack.c.bf16 %v1984, %v1983
        %v1999 = vpack.c.bf16 %v1986, %v1985
        %v2000 = vpack.c.bf16 %v1988, %v1987
        %v2001 = vpack.c.bf16 %v1990, %v1989
        %v2002 = vpack.c.bf16 %v1992, %v1991
        %v2003 = vpack.c.bf16 %v1994, %v1993
        %v2004 = vpack.c.bf16 %v1996, %v1995
        %v2005 = vadd.bf16 %v1893, %v1997
        %v2006 = vadd.bf16 %v1894, %v1998
        %v2007 = vadd.bf16 %v1895, %v1999
        %v2008 = vadd.bf16 %v1896, %v2000
        %v2009 = vadd.bf16 %v1897, %v2001
        %v2010 = vadd.bf16 %v1898, %v2002
        %v2011 = vadd.bf16 %v1899, %v2003
        %v2012 = vadd.bf16 %v1900, %v2004
        %2013 = vset.pattern.permute.xlu0 15
        %2014 = vperm.xlu0 %2013, %v202
        %v2015 = vpop.permute.xlu0 %2014
        %2016 = vset.pattern.permute.xlu0 15
        %2017 = vperm.xlu0 %2016, %v203
        %v2018 = vpop.permute.xlu0 %2017
        %2019 = vset.pattern.permute.xlu0 15
        %2020 = vperm.xlu0 %2019, %v204
        %v2021 = vpop.permute.xlu0 %2020
        %2022 = vset.pattern.permute.xlu0 15
        %2023 = vperm.xlu0 %2022, %v205
        %v2024 = vpop.permute.xlu0 %2023
        %2025 = vset.pattern.permute.xlu0 15
        %2026 = vperm.xlu0 %2025, %v206
        %v2027 = vpop.permute.xlu0 %2026
        %2028 = vset.pattern.permute.xlu0 15
        %2029 = vperm.xlu0 %2028, %v207
        %v2030 = vpop.permute.xlu0 %2029
        %2031 = vset.pattern.permute.xlu0 15
        %2032 = vperm.xlu0 %2031, %v208
        %v2033 = vpop.permute.xlu0 %2032
        %2034 = vset.pattern.permute.xlu0 15
        %2035 = vperm.xlu0 %2034, %v209
        %v2036 = vpop.permute.xlu0 %2035
        %2037 = vset.pattern.permute.xlu0 15
        %2038 = vperm.xlu0 %2037, %v210
        %v2039 = vpop.permute.xlu0 %2038
        %2040 = vset.pattern.permute.xlu0 15
        %2041 = vperm.xlu0 %2040, %v211
        %v2042 = vpop.permute.xlu0 %2041
        %2043 = vset.pattern.permute.xlu0 15
        %2044 = vperm.xlu0 %2043, %v212
        %v2045 = vpop.permute.xlu0 %2044
        %2046 = vset.pattern.permute.xlu0 15
        %2047 = vperm.xlu0 %2046, %v213
        %v2048 = vpop.permute.xlu0 %2047
        %2049 = vset.pattern.permute.xlu0 15
        %2050 = vperm.xlu0 %2049, %v214
        %v2051 = vpop.permute.xlu0 %2050
        %2052 = vset.pattern.permute.xlu0 15
        %2053 = vperm.xlu0 %2052, %v215
        %v2054 = vpop.permute.xlu0 %2053
        %2055 = vset.pattern.permute.xlu0 15
        %2056 = vperm.xlu0 %2055, %v216
        %v2057 = vpop.permute.xlu0 %2056
        %2058 = vset.pattern.permute.xlu0 15
        %2059 = vperm.xlu0 %2058, %v217
        %v2060 = vpop.permute.xlu0 %2059
        %vm2061 = vcmp.eq.s32.totalorder %v2015, %v332
        %vm2062 = vcmp.eq.s32.totalorder %v2018, %v332
        %vm2063 = vcmp.eq.s32.totalorder %v2021, %v332
        %vm2064 = vcmp.eq.s32.totalorder %v2024, %v332
        %vm2065 = vcmp.eq.s32.totalorder %v2027, %v332
        %vm2066 = vcmp.eq.s32.totalorder %v2030, %v332
        %vm2067 = vcmp.eq.s32.totalorder %v2033, %v332
        %vm2068 = vcmp.eq.s32.totalorder %v2036, %v332
        %vm2069 = vcmp.eq.s32.totalorder %v2039, %v332
        %vm2070 = vcmp.eq.s32.totalorder %v2042, %v332
        %vm2071 = vcmp.eq.s32.totalorder %v2045, %v332
        %vm2072 = vcmp.eq.s32.totalorder %v2048, %v332
        %vm2073 = vcmp.eq.s32.totalorder %v2051, %v332
        %vm2074 = vcmp.eq.s32.totalorder %v2054, %v332
        %vm2075 = vcmp.eq.s32.totalorder %v2057, %v332
        %vm2076 = vcmp.eq.s32.totalorder %v2060, %v332
        %v2077 = vsel %vm2061, 1, 0
        %v2078 = vsel %vm2062, 1, 0
        %v2079 = vsel %vm2063, 1, 0
        %v2080 = vsel %vm2064, 1, 0
        %v2081 = vsel %vm2065, 1, 0
        %v2082 = vsel %vm2066, 1, 0
        %v2083 = vsel %vm2067, 1, 0
        %v2084 = vsel %vm2068, 1, 0
        %v2085 = vsel %vm2069, 1, 0
        %v2086 = vsel %vm2070, 1, 0
        %v2087 = vsel %vm2071, 1, 0
        %v2088 = vsel %vm2072, 1, 0
        %v2089 = vsel %vm2073, 1, 0
        %v2090 = vsel %vm2074, 1, 0
        %v2091 = vsel %vm2075, 1, 0
        %v2092 = vsel %vm2076, 1, 0
        %v2093 = vcvt.s32.f32 %v2077
        %v2094 = vcvt.s32.f32 %v2078
        %v2095 = vcvt.s32.f32 %v2079
        %v2096 = vcvt.s32.f32 %v2080
        %v2097 = vcvt.s32.f32 %v2081
        %v2098 = vcvt.s32.f32 %v2082
        %v2099 = vcvt.s32.f32 %v2083
        %v2100 = vcvt.s32.f32 %v2084
        %v2101 = vcvt.s32.f32 %v2085
        %v2102 = vcvt.s32.f32 %v2086
        %v2103 = vcvt.s32.f32 %v2087
        %v2104 = vcvt.s32.f32 %v2088
        %v2105 = vcvt.s32.f32 %v2089
        %v2106 = vcvt.s32.f32 %v2090
        %v2107 = vcvt.s32.f32 %v2091
        %v2108 = vcvt.s32.f32 %v2092
        %v2109 = vpack.c.bf16 %v2094, %v2093
        %v2110 = vpack.c.bf16 %v2096, %v2095
        %v2111 = vpack.c.bf16 %v2098, %v2097
        %v2112 = vpack.c.bf16 %v2100, %v2099
        %v2113 = vpack.c.bf16 %v2102, %v2101
        %v2114 = vpack.c.bf16 %v2104, %v2103
        %v2115 = vpack.c.bf16 %v2106, %v2105
        %v2116 = vpack.c.bf16 %v2108, %v2107
        %v2117 = vadd.bf16 %v2005, %v2109
        %v2118 = vadd.bf16 %v2006, %v2110
        %v2119 = vadd.bf16 %v2007, %v2111
        %v2120 = vadd.bf16 %v2008, %v2112
        %v2121 = vadd.bf16 %v2009, %v2113
        %v2122 = vadd.bf16 %v2010, %v2114
        %v2123 = vadd.bf16 %v2011, %v2115
        %v2124 = vadd.bf16 %v2012, %v2116
        %vm2125 = vcmp.gt.s32.totalorder %v332, 0
        %v2126 = vsel %vm2125, 1, 0
        %vm2127 = vcmp.eq.s32.totalorder %v2126, 1
        %vm2128 = vmpackc.low %vm2127, %vm2127
        %v2129 = vsel %vm2128, 65537, 0
        %v2130 = vlaneseq
        %v2131 = vshrl.u32 %v2130, 7
        %v2132 = vsub.s32 0, %v2131
        %v2133 = vrot.slane %v2129, %v2132
        %vm2134 = vcmp.ne.s16.totalorder %v2133, 0
        %v2135 = vsel %vm2134, %v2117, 0
        %v2136 = vsel %vm2134, %v2118, 0
        %v2137 = vsel %vm2134, %v2119, 0
        %v2138 = vsel %vm2134, %v2120, 0
        %v2139 = vsel %vm2134, %v2121, 0
        %v2140 = vsel %vm2134, %v2122, 0
        %v2141 = vsel %vm2134, %v2123, 0
        %v2142 = vsel %vm2134, %v2124, 0
        %v2159 = vunpack.c.l.b16 %v218
        %v2160 = vunpack.c.l.b16 %v219
        %v2161 = vunpack.c.l.b16 %v220
        %v2162 = vunpack.c.l.b16 %v221
        %v2163 = vunpack.c.l.b16 %v222
        %v2164 = vunpack.c.l.b16 %v223
        %v2165 = vunpack.c.l.b16 %v224
        %v2166 = vunpack.c.l.b16 %v225
        %v2167 = vunpack.c.l.b16 %v226
        %v2168 = vunpack.c.l.b16 %v227
        %v2169 = vunpack.c.l.b16 %v228
        %v2170 = vunpack.c.l.b16 %v229
        %v2171 = vunpack.c.l.b16 %v230
        %v2172 = vunpack.c.l.b16 %v231
        %v2173 = vunpack.c.l.b16 %v232
        %v2174 = vunpack.c.l.b16 %v233
        %v2175 = vpack.c.b16 %v2160, %v2159
        %v2176 = vpack.c.b16 %v2162, %v2161
        %v2177 = vpack.c.b16 %v2164, %v2163
        %v2178 = vpack.c.b16 %v2166, %v2165
        %v2179 = vpack.c.b16 %v2168, %v2167
        %v2180 = vpack.c.b16 %v2170, %v2169
        %v2181 = vpack.c.b16 %v2172, %v2171
        %v2182 = vpack.c.b16 %v2174, %v2173
        %2191 = vmatprep.subr.bf16.mxu0 0
        %2192 = vmatpush1.bf16.msra.mxu0 %v2175
        %2193 = vmatprep.subr.bf16.mxu0 0
        %2194 = vmatpush1.bf16.msra.mxu0 %v2176
        %2195 = vmatprep.subr.bf16.mxu0 0
        %2196 = vmatpush1.bf16.msra.mxu0 %v2177
        %2197 = vmatprep.subr.bf16.mxu0 0
        %2198 = vmatpush1.bf16.msra.mxu0 %v2178
        %2199 = vmatprep.subr.bf16.mxu0 0
        %2200 = vmatpush1.bf16.msra.mxu0 %v2179
        %2201 = vmatprep.subr.bf16.mxu0 0
        %2202 = vmatpush1.bf16.msra.mxu0 %v2180
        %2203 = vmatprep.subr.bf16.mxu0 0
        %2204 = vmatpush1.bf16.msra.mxu0 %v2181
        %2205 = vmatprep.subr.bf16.mxu0 0
        %2206 = vmatpush1.bf16.msra.mxu0 %v2182
        %2207 = vmatprep.subr.bf16.mxu0 0
        %2208 = vmatpush1.bf16.msra.mxu0 0
        %2209 = vmatprep.subr.bf16.mxu0 0
        %2210 = vmatpush1.bf16.msra.mxu0 0
        %2211 = vmatprep.subr.bf16.mxu0 0
        %2212 = vmatpush1.bf16.msra.mxu0 0
        %2213 = vmatprep.subr.bf16.mxu0 0
        %2214 = vmatpush1.bf16.msra.mxu0 0
        %2215 = vmatprep.subr.bf16.mxu0 0
        %2216 = vmatpush1.bf16.msra.mxu0 0
        %2217 = vmatprep.subr.bf16.mxu0 0
        %2218 = vmatpush1.bf16.msra.mxu0 0
        %2219 = vmatprep.subr.bf16.mxu0 0
        %2220 = vmatpush1.bf16.msra.mxu0 0
        %2221 = vmatprep.subr.bf16.mxu0 0
        %2222 = vmatpush1.bf16.msra.mxu0 0
        %2223 = vmatprep.mubr.bf16.mxu0 0
        %2224 = vmatmul.mubr.bf16.gmra.mrb[0].mxu0 %v2135
        %v2225 = vpop.f32.mrb[0].mxu0
        %v2226 = vadd.f32 0.0, %v2225
        %v2227 = vpop.f32.mrb[0].mxu0
        %v2228 = vpop.f32.mrb[0].mxu0
        %v2229 = vadd.f32 0.0, %v2228
        %v2230 = vpop.f32.mrb[0].mxu0
        %2231 = vmatprep.mubr.bf16.mxu0 0
        %2232 = vmatmul.mubr.bf16.gmra.mrb[0].mxu0 %v2136
        %v2233 = vpop.f32.mrb[0].mxu0
        %v2234 = vadd.f32 0.0, %v2233
        %v2235 = vpop.f32.mrb[0].mxu0
        %v2236 = vpop.f32.mrb[0].mxu0
        %v2237 = vadd.f32 0.0, %v2236
        %v2238 = vpop.f32.mrb[0].mxu0
        %2239 = vmatprep.mubr.bf16.mxu0 0
        %2240 = vmatmul.mubr.bf16.gmra.mrb[0].mxu0 %v2137
        %v2241 = vpop.f32.mrb[0].mxu0
        %v2242 = vadd.f32 0.0, %v2241
        %v2243 = vpop.f32.mrb[0].mxu0
        %v2244 = vpop.f32.mrb[0].mxu0
        %v2245 = vadd.f32 0.0, %v2244
        %v2246 = vpop.f32.mrb[0].mxu0
        %2247 = vmatprep.mubr.bf16.mxu0 0
        %2248 = vmatmul.mubr.bf16.gmra.mrb[0].mxu0 %v2138
        %v2249 = vpop.f32.mrb[0].mxu0
        %v2250 = vadd.f32 0.0, %v2249
        %v2251 = vpop.f32.mrb[0].mxu0
        %v2252 = vpop.f32.mrb[0].mxu0
        %v2253 = vadd.f32 0.0, %v2252
        %v2254 = vpop.f32.mrb[0].mxu0
        %2255 = vmatprep.mubr.bf16.mxu0 0
        %2256 = vmatmul.mubr.bf16.gmra.mrb[0].mxu0 %v2139
        %v2257 = vpop.f32.mrb[0].mxu0
        %v2258 = vadd.f32 0.0, %v2257
        %v2259 = vpop.f32.mrb[0].mxu0
        %v2260 = vpop.f32.mrb[0].mxu0
        %v2261 = vadd.f32 0.0, %v2260
        %v2262 = vpop.f32.mrb[0].mxu0
        %2263 = vmatprep.mubr.bf16.mxu0 0
        %2264 = vmatmul.mubr.bf16.gmra.mrb[0].mxu0 %v2140
        %v2265 = vpop.f32.mrb[0].mxu0
        %v2266 = vadd.f32 0.0, %v2265
        %v2267 = vpop.f32.mrb[0].mxu0
        %v2268 = vpop.f32.mrb[0].mxu0
        %v2269 = vadd.f32 0.0, %v2268
        %v2270 = vpop.f32.mrb[0].mxu0
        %2271 = vmatprep.mubr.bf16.mxu0 0
        %2272 = vmatmul.mubr.bf16.gmra.mrb[0].mxu0 %v2141
        %v2273 = vpop.f32.mrb[0].mxu0
        %v2274 = vadd.f32 0.0, %v2273
        %v2275 = vpop.f32.mrb[0].mxu0
        %v2276 = vpop.f32.mrb[0].mxu0
        %v2277 = vadd.f32 0.0, %v2276
        %v2278 = vpop.f32.mrb[0].mxu0
        %2279 = vmatprep.mubr.bf16.mxu0 0
        %2280 = vmatmul.mubr.bf16.gmra.mrb[0].mxu0 %v2142
        %v2281 = vpop.f32.mrb[0].mxu0
        %v2282 = vadd.f32 0.0, %v2281
        %v2283 = vpop.f32.mrb[0].mxu0
        %v2284 = vpop.f32.mrb[0].mxu0
        %v2285 = vadd.f32 0.0, %v2284
        %v2286 = vpop.f32.mrb[0].mxu0
        %2287 = vdwg.mxu0
        %v2288 = vadd.f32 %v285, 1e-09
        %v2289 = vadd.f32 %v288, 1e-09
        %v2290 = vadd.f32 %v291, 1e-09
        %v2291 = vadd.f32 %v294, 1e-09
        %v2292 = vadd.f32 %v297, 1e-09
        %v2293 = vadd.f32 %v300, 1e-09
        %v2294 = vadd.f32 %v303, 1e-09
        %v2295 = vadd.f32 %v306, 1e-09
        %v2296 = vadd.f32 %v309, 1e-09
        %v2297 = vadd.f32 %v312, 1e-09
        %v2298 = vadd.f32 %v315, 1e-09
        %v2299 = vadd.f32 %v318, 1e-09
        %v2300 = vadd.f32 %v321, 1e-09
        %v2301 = vadd.f32 %v324, 1e-09
        %v2302 = vadd.f32 %v327, 1e-09
        %v2303 = vadd.f32 %v330, 1e-09
        %v2304 = vrcp.pop %v2288
        %v2305 = vrcp.pop %v2289
        %v2306 = vrcp.pop %v2290
        %v2307 = vrcp.pop %v2291
        %v2308 = vrcp.pop %v2292
        %v2309 = vrcp.pop %v2293
        %v2310 = vrcp.pop %v2294
        %v2311 = vrcp.pop %v2295
        %v2312 = vrcp.pop %v2296
        %v2313 = vrcp.pop %v2297
        %v2314 = vrcp.pop %v2298
        %v2315 = vrcp.pop %v2299
        %v2316 = vrcp.pop %v2300
        %v2317 = vrcp.pop %v2301
        %v2318 = vrcp.pop %v2302
        %v2319 = vrcp.pop %v2303
        %v2320 = vmul.f32 %v2226, %v2304
        %v2321 = vmul.f32 %v2229, %v2305
        %v2322 = vmul.f32 %v2234, %v2306
        %v2323 = vmul.f32 %v2237, %v2307
        %v2324 = vmul.f32 %v2242, %v2308
        %v2325 = vmul.f32 %v2245, %v2309
        %v2326 = vmul.f32 %v2250, %v2310
        %v2327 = vmul.f32 %v2253, %v2311
        %v2328 = vmul.f32 %v2258, %v2312
        %v2329 = vmul.f32 %v2261, %v2313
        %v2330 = vmul.f32 %v2266, %v2314
        %v2331 = vmul.f32 %v2269, %v2315
        %v2332 = vmul.f32 %v2274, %v2316
        %v2333 = vmul.f32 %v2277, %v2317
        %v2334 = vmul.f32 %v2282, %v2318
        %v2335 = vmul.f32 %v2285, %v2319
        %v2336 = vpack.c.bf16 %v2321, %v2320
        %v2337 = vpack.c.bf16 %v2323, %v2322
        %v2338 = vpack.c.bf16 %v2325, %v2324
        %v2339 = vpack.c.bf16 %v2327, %v2326
        %v2340 = vpack.c.bf16 %v2329, %v2328
        %v2341 = vpack.c.bf16 %v2331, %v2330
        %v2342 = vpack.c.bf16 %v2333, %v2332
        %v2343 = vpack.c.bf16 %v2335, %v2334
        %v2344 = vld [vmem:[%s2] sm:$0xf]
        %v2345 = vld [vmem:[%s2 + $0x4] sm:$0xf]
        %v2346 = vld [vmem:[%s2 + $0x8] sm:$0xf]
        %v2347 = vld [vmem:[%s2 + $0xc] sm:$0xf]
        %v2348 = vld [vmem:[%s2 + $0x10] sm:$0xf]
        %v2349 = vld [vmem:[%s2 + $0x14] sm:$0xf]
        %v2350 = vld [vmem:[%s2 + $0x18] sm:$0xf]
        %v2351 = vld [vmem:[%s2 + $0x1c] sm:$0xf]
        %v2352 = vld [vmem:[%s2 + $0x20] sm:$0xf]
        %v2353 = vld [vmem:[%s2 + $0x24] sm:$0xf]
        %v2354 = vld [vmem:[%s2 + $0x28] sm:$0xf]
        %v2355 = vld [vmem:[%s2 + $0x2c] sm:$0xf]
        %v2356 = vld [vmem:[%s2 + $0x30] sm:$0xf]
        %v2357 = vld [vmem:[%s2 + $0x34] sm:$0xf]
        %v2358 = vld [vmem:[%s2 + $0x38] sm:$0xf]
        %v2359 = vld [vmem:[%s2 + $0x3c] sm:$0xf]
        %v2360 = vld [vmem:[%s3] sm:$0x1]
        %v2361 = vld [vmem:[%s3 + $0x1] sm:$0x1]
        %v2362 = vld [vmem:[%s3 + $0x2] sm:$0x1]
        %v2363 = vlaneseq
        %v2364 = vshrl.u32 %v2363, 7
        %v2365 = vsub.s32 0, %v2364
        %v2366 = vrot.slane %v2360, %v2365
        %v2383 = vunpack.c.l.b16 %v2344
        %v2384 = vunpack.c.l.b16 %v2345
        %v2385 = vunpack.c.l.b16 %v2346
        %v2386 = vunpack.c.l.b16 %v2347
        %v2387 = vunpack.c.l.b16 %v2348
        %v2388 = vunpack.c.l.b16 %v2349
        %v2389 = vunpack.c.l.b16 %v2350
        %v2390 = vunpack.c.l.b16 %v2351
        %v2391 = vunpack.c.l.b16 %v2352
        %v2392 = vunpack.c.l.b16 %v2353
        %v2393 = vunpack.c.l.b16 %v2354
        %v2394 = vunpack.c.l.b16 %v2355
        %v2395 = vunpack.c.l.b16 %v2356
        %v2396 = vunpack.c.l.b16 %v2357
        %v2397 = vunpack.c.l.b16 %v2358
        %v2398 = vunpack.c.l.b16 %v2359
        %v2399 = vpack.c.b16 %v2384, %v2383
        %v2400 = vpack.c.b16 %v2386, %v2385
        %v2401 = vpack.c.b16 %v2388, %v2387
        %v2402 = vpack.c.b16 %v2390, %v2389
        %v2403 = vpack.c.b16 %v2392, %v2391
        %v2404 = vpack.c.b16 %v2394, %v2393
        %v2405 = vpack.c.b16 %v2396, %v2395
        %v2406 = vpack.c.b16 %v2398, %v2397
        %2415 = vmatprep.subr.bf16.mxu0 0
        %2416 = vmatpush1.bf16.msra.mxu0 %v2399
        %2417 = vmatprep.subr.bf16.mxu0 0
        %2418 = vmatpush1.bf16.msra.mxu0 %v2400
        %2419 = vmatprep.subr.bf16.mxu0 0
        %2420 = vmatpush1.bf16.msra.mxu0 %v2401
        %2421 = vmatprep.subr.bf16.mxu0 0
        %2422 = vmatpush1.bf16.msra.mxu0 %v2402
        %2423 = vmatprep.subr.bf16.mxu0 0
        %2424 = vmatpush1.bf16.msra.mxu0 %v2403
        %2425 = vmatprep.subr.bf16.mxu0 0
        %2426 = vmatpush1.bf16.msra.mxu0 %v2404
        %2427 = vmatprep.subr.bf16.mxu0 0
        %2428 = vmatpush1.bf16.msra.mxu0 %v2405
        %2429 = vmatprep.subr.bf16.mxu0 0
        %2430 = vmatpush1.bf16.msra.mxu0 %v2406
        %2431 = vmatprep.subr.bf16.mxu0 0
        %2432 = vmatpush1.bf16.msra.mxu0 0
        %2433 = vmatprep.subr.bf16.mxu0 0
        %2434 = vmatpush1.bf16.msra.mxu0 0
        %2435 = vmatprep.subr.bf16.mxu0 0
        %2436 = vmatpush1.bf16.msra.mxu0 0
        %2437 = vmatprep.subr.bf16.mxu0 0
        %2438 = vmatpush1.bf16.msra.mxu0 0
        %2439 = vmatprep.subr.bf16.mxu0 0
        %2440 = vmatpush1.bf16.msra.mxu0 0
        %2441 = vmatprep.subr.bf16.mxu0 0
        %2442 = vmatpush1.bf16.msra.mxu0 0
        %2443 = vmatprep.subr.bf16.mxu0 0
        %2444 = vmatpush1.bf16.msra.mxu0 0
        %2445 = vmatprep.subr.bf16.mxu0 0
        %2446 = vmatpush1.bf16.msra.mxu0 0
        %2447 = vmatprep.mubr.bf16.mxu0 0
        %2448 = vmatmul.mubr.bf16.gmra.mrb[0].mxu0 %v2336
        %v2449 = vpop.f32.mrb[0].mxu0
        %v2450 = vadd.f32 %v2366, %v2449
        %v2451 = vpop.f32.mrb[0].mxu0
        %v2452 = vpop.f32.mrb[0].mxu0
        %v2453 = vadd.f32 %v2366, %v2452
        %v2454 = vpop.f32.mrb[0].mxu0
        %2455 = vmatprep.mubr.bf16.mxu0 0
        %2456 = vmatmul.mubr.bf16.gmra.mrb[0].mxu0 %v2337
        %v2457 = vpop.f32.mrb[0].mxu0
        %v2458 = vadd.f32 %v2366, %v2457
        %v2459 = vpop.f32.mrb[0].mxu0
        %v2460 = vpop.f32.mrb[0].mxu0
        %v2461 = vadd.f32 %v2366, %v2460
        %v2462 = vpop.f32.mrb[0].mxu0
        %2463 = vmatprep.mubr.bf16.mxu0 0
        %2464 = vmatmul.mubr.bf16.gmra.mrb[0].mxu0 %v2338
        %v2465 = vpop.f32.mrb[0].mxu0
        %v2466 = vadd.f32 %v2366, %v2465
        %v2467 = vpop.f32.mrb[0].mxu0
        %v2468 = vpop.f32.mrb[0].mxu0
        %v2469 = vadd.f32 %v2366, %v2468
        %v2470 = vpop.f32.mrb[0].mxu0
        %2471 = vmatprep.mubr.bf16.mxu0 0
        %2472 = vmatmul.mubr.bf16.gmra.mrb[0].mxu0 %v2339
        %v2473 = vpop.f32.mrb[0].mxu0
        %v2474 = vadd.f32 %v2366, %v2473
        %v2475 = vpop.f32.mrb[0].mxu0
        %v2476 = vpop.f32.mrb[0].mxu0
        %v2477 = vadd.f32 %v2366, %v2476
        %v2478 = vpop.f32.mrb[0].mxu0
        %2479 = vmatprep.mubr.bf16.mxu0 0
        %2480 = vmatmul.mubr.bf16.gmra.mrb[0].mxu0 %v2340
        %v2481 = vpop.f32.mrb[0].mxu0
        %v2482 = vadd.f32 %v2366, %v2481
        %v2483 = vpop.f32.mrb[0].mxu0
        %v2484 = vpop.f32.mrb[0].mxu0
        %v2485 = vadd.f32 %v2366, %v2484
        %v2486 = vpop.f32.mrb[0].mxu0
        %2487 = vmatprep.mubr.bf16.mxu0 0
        %2488 = vmatmul.mubr.bf16.gmra.mrb[0].mxu0 %v2341
        %v2489 = vpop.f32.mrb[0].mxu0
        %v2490 = vadd.f32 %v2366, %v2489
        %v2491 = vpop.f32.mrb[0].mxu0
        %v2492 = vpop.f32.mrb[0].mxu0
        %v2493 = vadd.f32 %v2366, %v2492
        %v2494 = vpop.f32.mrb[0].mxu0
        %2495 = vmatprep.mubr.bf16.mxu0 0
        %2496 = vmatmul.mubr.bf16.gmra.mrb[0].mxu0 %v2342
        %v2497 = vpop.f32.mrb[0].mxu0
        %v2498 = vadd.f32 %v2366, %v2497
        %v2499 = vpop.f32.mrb[0].mxu0
        %v2500 = vpop.f32.mrb[0].mxu0
        %v2501 = vadd.f32 %v2366, %v2500
        %v2502 = vpop.f32.mrb[0].mxu0
        %2503 = vmatprep.mubr.bf16.mxu0 0
        %2504 = vmatmul.mubr.bf16.gmra.mrb[0].mxu0 %v2343
        %v2505 = vpop.f32.mrb[0].mxu0
        %v2506 = vadd.f32 %v2366, %v2505
        %v2507 = vpop.f32.mrb[0].mxu0
        %v2508 = vpop.f32.mrb[0].mxu0
        %v2509 = vadd.f32 %v2366, %v2508
        %v2510 = vpop.f32.mrb[0].mxu0
        %2511 = vdwg.mxu0
        %2512 = vadd.xlane.f32.xlu0 %v2450
        %v2513 = vpop.xlane.xlu0 %2512
        %2514 = vadd.xlane.f32.xlu0 %v2453
        %v2515 = vpop.xlane.xlu0 %2514
        %2516 = vadd.xlane.f32.xlu0 %v2458
        %v2517 = vpop.xlane.xlu0 %2516
        %2518 = vadd.xlane.f32.xlu0 %v2461
        %v2519 = vpop.xlane.xlu0 %2518
        %2520 = vadd.xlane.f32.xlu0 %v2466
        %v2521 = vpop.xlane.xlu0 %2520
        %2522 = vadd.xlane.f32.xlu0 %v2469
        %v2523 = vpop.xlane.xlu0 %2522
        %2524 = vadd.xlane.f32.xlu0 %v2474
        %v2525 = vpop.xlane.xlu0 %2524
        %2526 = vadd.xlane.f32.xlu0 %v2477
        %v2527 = vpop.xlane.xlu0 %2526
        %2528 = vadd.xlane.f32.xlu0 %v2482
        %v2529 = vpop.xlane.xlu0 %2528
        %2530 = vadd.xlane.f32.xlu0 %v2485
        %v2531 = vpop.xlane.xlu0 %2530
        %2532 = vadd.xlane.f32.xlu0 %v2490
        %v2533 = vpop.xlane.xlu0 %2532
        %2534 = vadd.xlane.f32.xlu0 %v2493
        %v2535 = vpop.xlane.xlu0 %2534
        %2536 = vadd.xlane.f32.xlu0 %v2498
        %v2537 = vpop.xlane.xlu0 %2536
        %2538 = vadd.xlane.f32.xlu0 %v2501
        %v2539 = vpop.xlane.xlu0 %2538
        %2540 = vadd.xlane.f32.xlu0 %v2506
        %v2541 = vpop.xlane.xlu0 %2540
        %2542 = vadd.xlane.f32.xlu0 %v2509
        %v2543 = vpop.xlane.xlu0 %2542
        %v2544 = vrcp.pop 128.0
        %v2545 = vmul.f32 %v2513, %v2544
        %v2546 = vmul.f32 %v2515, %v2544
        %v2547 = vmul.f32 %v2517, %v2544
        %v2548 = vmul.f32 %v2519, %v2544
        %v2549 = vmul.f32 %v2521, %v2544
        %v2550 = vmul.f32 %v2523, %v2544
        %v2551 = vmul.f32 %v2525, %v2544
        %v2552 = vmul.f32 %v2527, %v2544
        %v2553 = vmul.f32 %v2529, %v2544
        %v2554 = vmul.f32 %v2531, %v2544
        %v2555 = vmul.f32 %v2533, %v2544
        %v2556 = vmul.f32 %v2535, %v2544
        %v2557 = vmul.f32 %v2537, %v2544
        %v2558 = vmul.f32 %v2539, %v2544
        %v2559 = vmul.f32 %v2541, %v2544
        %v2560 = vmul.f32 %v2543, %v2544
        %v2561 = vsub.f32 %v2450, %v2545
        %v2562 = vsub.f32 %v2453, %v2546
        %v2563 = vsub.f32 %v2458, %v2547
        %v2564 = vsub.f32 %v2461, %v2548
        %v2565 = vsub.f32 %v2466, %v2549
        %v2566 = vsub.f32 %v2469, %v2550
        %v2567 = vsub.f32 %v2474, %v2551
        %v2568 = vsub.f32 %v2477, %v2552
        %v2569 = vsub.f32 %v2482, %v2553
        %v2570 = vsub.f32 %v2485, %v2554
        %v2571 = vsub.f32 %v2490, %v2555
        %v2572 = vsub.f32 %v2493, %v2556
        %v2573 = vsub.f32 %v2498, %v2557
        %v2574 = vsub.f32 %v2501, %v2558
        %v2575 = vsub.f32 %v2506, %v2559
        %v2576 = vsub.f32 %v2509, %v2560
        %v2577 = vmul.f32 %v2561, %v2561
        %v2578 = vmul.f32 %v2562, %v2562
        %v2579 = vmul.f32 %v2563, %v2563
        %v2580 = vmul.f32 %v2564, %v2564
        %v2581 = vmul.f32 %v2565, %v2565
        %v2582 = vmul.f32 %v2566, %v2566
        %v2583 = vmul.f32 %v2567, %v2567
        %v2584 = vmul.f32 %v2568, %v2568
        %v2585 = vmul.f32 %v2569, %v2569
        %v2586 = vmul.f32 %v2570, %v2570
        %v2587 = vmul.f32 %v2571, %v2571
        %v2588 = vmul.f32 %v2572, %v2572
        %v2589 = vmul.f32 %v2573, %v2573
        %v2590 = vmul.f32 %v2574, %v2574
        %v2591 = vmul.f32 %v2575, %v2575
        %v2592 = vmul.f32 %v2576, %v2576
        %2593 = vadd.xlane.f32.xlu0 %v2577
        %v2594 = vpop.xlane.xlu0 %2593
        %2595 = vadd.xlane.f32.xlu0 %v2578
        %v2596 = vpop.xlane.xlu0 %2595
        %2597 = vadd.xlane.f32.xlu0 %v2579
        %v2598 = vpop.xlane.xlu0 %2597
        %2599 = vadd.xlane.f32.xlu0 %v2580
        %v2600 = vpop.xlane.xlu0 %2599
        %2601 = vadd.xlane.f32.xlu0 %v2581
        %v2602 = vpop.xlane.xlu0 %2601
        %2603 = vadd.xlane.f32.xlu0 %v2582
        %v2604 = vpop.xlane.xlu0 %2603
        %2605 = vadd.xlane.f32.xlu0 %v2583
        %v2606 = vpop.xlane.xlu0 %2605
        %2607 = vadd.xlane.f32.xlu0 %v2584
        %v2608 = vpop.xlane.xlu0 %2607
        %2609 = vadd.xlane.f32.xlu0 %v2585
        %v2610 = vpop.xlane.xlu0 %2609
        %2611 = vadd.xlane.f32.xlu0 %v2586
        %v2612 = vpop.xlane.xlu0 %2611
        %2613 = vadd.xlane.f32.xlu0 %v2587
        %v2614 = vpop.xlane.xlu0 %2613
        %2615 = vadd.xlane.f32.xlu0 %v2588
        %v2616 = vpop.xlane.xlu0 %2615
        %2617 = vadd.xlane.f32.xlu0 %v2589
        %v2618 = vpop.xlane.xlu0 %2617
        %2619 = vadd.xlane.f32.xlu0 %v2590
        %v2620 = vpop.xlane.xlu0 %2619
        %2621 = vadd.xlane.f32.xlu0 %v2591
        %v2622 = vpop.xlane.xlu0 %2621
        %2623 = vadd.xlane.f32.xlu0 %v2592
        %v2624 = vpop.xlane.xlu0 %2623
        %v2625 = vmul.f32 %v2594, %v2544
        %v2626 = vmul.f32 %v2596, %v2544
        %v2627 = vmul.f32 %v2598, %v2544
        %v2628 = vmul.f32 %v2600, %v2544
        %v2629 = vmul.f32 %v2602, %v2544
        %v2630 = vmul.f32 %v2604, %v2544
        %v2631 = vmul.f32 %v2606, %v2544
        %v2632 = vmul.f32 %v2608, %v2544
        %v2633 = vmul.f32 %v2610, %v2544
        %v2634 = vmul.f32 %v2612, %v2544
        %v2635 = vmul.f32 %v2614, %v2544
        %v2636 = vmul.f32 %v2616, %v2544
        %v2637 = vmul.f32 %v2618, %v2544
        %v2638 = vmul.f32 %v2620, %v2544
        %v2639 = vmul.f32 %v2622, %v2544
        %v2640 = vmul.f32 %v2624, %v2544
        %v2641 = vadd.f32 %v2625, 1e-05
        %v2642 = vadd.f32 %v2626, 1e-05
        %v2643 = vadd.f32 %v2627, 1e-05
        %v2644 = vadd.f32 %v2628, 1e-05
        %v2645 = vadd.f32 %v2629, 1e-05
        %v2646 = vadd.f32 %v2630, 1e-05
        %v2647 = vadd.f32 %v2631, 1e-05
        %v2648 = vadd.f32 %v2632, 1e-05
        %v2649 = vadd.f32 %v2633, 1e-05
        %v2650 = vadd.f32 %v2634, 1e-05
        %v2651 = vadd.f32 %v2635, 1e-05
        %v2652 = vadd.f32 %v2636, 1e-05
        %v2653 = vadd.f32 %v2637, 1e-05
        %v2654 = vadd.f32 %v2638, 1e-05
        %v2655 = vadd.f32 %v2639, 1e-05
        %v2656 = vadd.f32 %v2640, 1e-05
        %v2657 = vrsqrt.pop %v2641
        %v2658 = vrsqrt.pop %v2642
        %v2659 = vrsqrt.pop %v2643
        %v2660 = vrsqrt.pop %v2644
        %v2661 = vrsqrt.pop %v2645
        %v2662 = vrsqrt.pop %v2646
        %v2663 = vrsqrt.pop %v2647
        %v2664 = vrsqrt.pop %v2648
        %v2665 = vrsqrt.pop %v2649
        %v2666 = vrsqrt.pop %v2650
        %v2667 = vrsqrt.pop %v2651
        %v2668 = vrsqrt.pop %v2652
        %v2669 = vrsqrt.pop %v2653
        %v2670 = vrsqrt.pop %v2654
        %v2671 = vrsqrt.pop %v2655
        %v2672 = vrsqrt.pop %v2656
        %v2673 = vmul.f32 %v2561, %v2657
        %v2674 = vmul.f32 %v2562, %v2658
        %v2675 = vmul.f32 %v2563, %v2659
        %v2676 = vmul.f32 %v2564, %v2660
        %v2677 = vmul.f32 %v2565, %v2661
        %v2678 = vmul.f32 %v2566, %v2662
        %v2679 = vmul.f32 %v2567, %v2663
        %v2680 = vmul.f32 %v2568, %v2664
        %v2681 = vmul.f32 %v2569, %v2665
        %v2682 = vmul.f32 %v2570, %v2666
        %v2683 = vmul.f32 %v2571, %v2667
        %v2684 = vmul.f32 %v2572, %v2668
        %v2685 = vmul.f32 %v2573, %v2669
        %v2686 = vmul.f32 %v2574, %v2670
        %v2687 = vmul.f32 %v2575, %v2671
        %v2688 = vmul.f32 %v2576, %v2672
        %v2689 = vlaneseq
        %v2690 = vshrl.u32 %v2689, 7
        %v2691 = vsub.s32 0, %v2690
        %v2692 = vrot.slane %v2361, %v2691
        %v2693 = vmul.f32 %v2673, %v2692
        %v2694 = vmul.f32 %v2674, %v2692
        %v2695 = vmul.f32 %v2675, %v2692
        %v2696 = vmul.f32 %v2676, %v2692
        %v2697 = vmul.f32 %v2677, %v2692
        %v2698 = vmul.f32 %v2678, %v2692
        %v2699 = vmul.f32 %v2679, %v2692
        %v2700 = vmul.f32 %v2680, %v2692
        %v2701 = vmul.f32 %v2681, %v2692
        %v2702 = vmul.f32 %v2682, %v2692
        %v2703 = vmul.f32 %v2683, %v2692
        %v2704 = vmul.f32 %v2684, %v2692
        %v2705 = vmul.f32 %v2685, %v2692
        %v2706 = vmul.f32 %v2686, %v2692
        %v2707 = vmul.f32 %v2687, %v2692
        %v2708 = vmul.f32 %v2688, %v2692
        %v2709 = vlaneseq
        %v2710 = vshrl.u32 %v2709, 7
        %v2711 = vsub.s32 0, %v2710
        %v2712 = vrot.slane %v2362, %v2711
        %v2713 = vadd.f32 %v2693, %v2712
        %v2714 = vadd.f32 %v2694, %v2712
        %v2715 = vadd.f32 %v2695, %v2712
        %v2716 = vadd.f32 %v2696, %v2712
        %v2717 = vadd.f32 %v2697, %v2712
        %v2718 = vadd.f32 %v2698, %v2712
        %v2719 = vadd.f32 %v2699, %v2712
        %v2720 = vadd.f32 %v2700, %v2712
        %v2721 = vadd.f32 %v2701, %v2712
        %v2722 = vadd.f32 %v2702, %v2712
        %v2723 = vadd.f32 %v2703, %v2712
        %v2724 = vadd.f32 %v2704, %v2712
        %v2725 = vadd.f32 %v2705, %v2712
        %v2726 = vadd.f32 %v2706, %v2712
        %v2727 = vadd.f32 %v2707, %v2712
        %v2728 = vadd.f32 %v2708, %v2712
        %v2729 = vmul.f32 %v2713, %v2713
        %v2730 = vmul.f32 %v2714, %v2714
        %v2731 = vmul.f32 %v2715, %v2715
        %v2732 = vmul.f32 %v2716, %v2716
        %v2733 = vmul.f32 %v2717, %v2717
        %v2734 = vmul.f32 %v2718, %v2718
        %v2735 = vmul.f32 %v2719, %v2719
        %v2736 = vmul.f32 %v2720, %v2720
        %v2737 = vmul.f32 %v2721, %v2721
        %v2738 = vmul.f32 %v2722, %v2722
        %v2739 = vmul.f32 %v2723, %v2723
        %v2740 = vmul.f32 %v2724, %v2724
        %v2741 = vmul.f32 %v2725, %v2725
        %v2742 = vmul.f32 %v2726, %v2726
        %v2743 = vmul.f32 %v2727, %v2727
        %v2744 = vmul.f32 %v2728, %v2728
        %2745 = vadd.xlane.f32.xlu0 %v2729
        %v2746 = vpop.xlane.xlu0 %2745
        %2747 = vadd.xlane.f32.xlu0 %v2730
        %v2748 = vpop.xlane.xlu0 %2747
        %2749 = vadd.xlane.f32.xlu0 %v2731
        %v2750 = vpop.xlane.xlu0 %2749
        %2751 = vadd.xlane.f32.xlu0 %v2732
        %v2752 = vpop.xlane.xlu0 %2751
        %2753 = vadd.xlane.f32.xlu0 %v2733
        %v2754 = vpop.xlane.xlu0 %2753
        %2755 = vadd.xlane.f32.xlu0 %v2734
        %v2756 = vpop.xlane.xlu0 %2755
        %2757 = vadd.xlane.f32.xlu0 %v2735
        %v2758 = vpop.xlane.xlu0 %2757
        %2759 = vadd.xlane.f32.xlu0 %v2736
        %v2760 = vpop.xlane.xlu0 %2759
        %2761 = vadd.xlane.f32.xlu0 %v2737
        %v2762 = vpop.xlane.xlu0 %2761
        %2763 = vadd.xlane.f32.xlu0 %v2738
        %v2764 = vpop.xlane.xlu0 %2763
        %2765 = vadd.xlane.f32.xlu0 %v2739
        %v2766 = vpop.xlane.xlu0 %2765
        %2767 = vadd.xlane.f32.xlu0 %v2740
        %v2768 = vpop.xlane.xlu0 %2767
        %2769 = vadd.xlane.f32.xlu0 %v2741
        %v2770 = vpop.xlane.xlu0 %2769
        %2771 = vadd.xlane.f32.xlu0 %v2742
        %v2772 = vpop.xlane.xlu0 %2771
        %2773 = vadd.xlane.f32.xlu0 %v2743
        %v2774 = vpop.xlane.xlu0 %2773
        %2775 = vadd.xlane.f32.xlu0 %v2744
        %v2776 = vpop.xlane.xlu0 %2775
        %v2777 = vmax.f32 %v2746, 1e-24
        %v2778 = vmax.f32 %v2748, 1e-24
        %v2779 = vmax.f32 %v2750, 1e-24
        %v2780 = vmax.f32 %v2752, 1e-24
        %v2781 = vmax.f32 %v2754, 1e-24
        %v2782 = vmax.f32 %v2756, 1e-24
        %v2783 = vmax.f32 %v2758, 1e-24
        %v2784 = vmax.f32 %v2760, 1e-24
        %v2785 = vmax.f32 %v2762, 1e-24
        %v2786 = vmax.f32 %v2764, 1e-24
        %v2787 = vmax.f32 %v2766, 1e-24
        %v2788 = vmax.f32 %v2768, 1e-24
        %v2789 = vmax.f32 %v2770, 1e-24
        %v2790 = vmax.f32 %v2772, 1e-24
        %v2791 = vmax.f32 %v2774, 1e-24
        %v2792 = vmax.f32 %v2776, 1e-24
        %v2793 = vrsqrt.pop %v2777
        %v2794 = vrsqrt.pop %v2778
        %v2795 = vrsqrt.pop %v2779
        %v2796 = vrsqrt.pop %v2780
        %v2797 = vrsqrt.pop %v2781
        %v2798 = vrsqrt.pop %v2782
        %v2799 = vrsqrt.pop %v2783
        %v2800 = vrsqrt.pop %v2784
        %v2801 = vrsqrt.pop %v2785
        %v2802 = vrsqrt.pop %v2786
        %v2803 = vrsqrt.pop %v2787
        %v2804 = vrsqrt.pop %v2788
        %v2805 = vrsqrt.pop %v2789
        %v2806 = vrsqrt.pop %v2790
        %v2807 = vrsqrt.pop %v2791
        %v2808 = vrsqrt.pop %v2792
        %v2809 = vmul.f32 %v2713, %v2793
        %v2810 = vmul.f32 %v2714, %v2794
        %v2811 = vmul.f32 %v2715, %v2795
        %v2812 = vmul.f32 %v2716, %v2796
        %v2813 = vmul.f32 %v2717, %v2797
        %v2814 = vmul.f32 %v2718, %v2798
        %v2815 = vmul.f32 %v2719, %v2799
        %v2816 = vmul.f32 %v2720, %v2800
        %v2817 = vmul.f32 %v2721, %v2801
        %v2818 = vmul.f32 %v2722, %v2802
        %v2819 = vmul.f32 %v2723, %v2803
        %v2820 = vmul.f32 %v2724, %v2804
        %v2821 = vmul.f32 %v2725, %v2805
        %v2822 = vmul.f32 %v2726, %v2806
        %v2823 = vmul.f32 %v2727, %v2807
        %v2824 = vmul.f32 %v2728, %v2808
        %2825 = vst [vmem:[%s191] sm:$0xff] %v2809
        %2826 = vst [vmem:[%s191 + $0x8] sm:$0xff] %v2810
        %2827 = vst [vmem:[%s191 + $0x10] sm:$0xff] %v2811
        %2828 = vst [vmem:[%s191 + $0x18] sm:$0xff] %v2812
        %2829 = vst [vmem:[%s191 + $0x20] sm:$0xff] %v2813
        %2830 = vst [vmem:[%s191 + $0x28] sm:$0xff] %v2814
        %2831 = vst [vmem:[%s191 + $0x30] sm:$0xff] %v2815
        %2832 = vst [vmem:[%s191 + $0x38] sm:$0xff] %v2816
        %2833 = vst [vmem:[%s191 + $0x40] sm:$0xff] %v2817
        %2834 = vst [vmem:[%s191 + $0x48] sm:$0xff] %v2818
        %2835 = vst [vmem:[%s191 + $0x50] sm:$0xff] %v2819
        %2836 = vst [vmem:[%s191 + $0x58] sm:$0xff] %v2820
        %2837 = vst [vmem:[%s191 + $0x60] sm:$0xff] %v2821
        %2838 = vst [vmem:[%s191 + $0x68] sm:$0xff] %v2822
        %2839 = vst [vmem:[%s191 + $0x70] sm:$0xff] %v2823
        %2840 = vst [vmem:[%s191 + $0x78] sm:$0xff] %v2824
        %s2841 = sand.u32 %s115, 1
        %s2842 = scalar_lea.sflag [#allocation3], %s2841
        %s2843 = sand.u32 %s115, 1
        %s2844 = smul.addr %s2843, 128
        %s2845 = scalar_lea.vmem [#allocation2], %s2844
        // Predicated region
        $region37: #{tpu_custom_call.1} parent=35 // pred_check
          %p2846 = pneg %p125
        $region38: #{tpu_custom_call.1} parent=35 // pred_check_branch
          %2848 = sbr.rel (%p2846) target = $region40
        $region39: #{tpu_custom_call.1} parent=35 // pred_region
          %s2849 = smul.u32 16, %s18
          %s2851 = ssub.s32 2048, 2048
          %2852 = vsyncadd %s2842, %s2851
          %s2853 = smul.addr %s2849, 128
          %s2854 = scalar_lea.hbm %s4, %s2853
          %s2855 = sshll.u32 %s2845, 4
          %s2856 = int_to_ptr.vmem [resolvable:$true] %s2855
          %2861 = dma.vmem_to_hbm [thread:$0]  %s2856, 2048, %s2854, %s2842, 128, 128, 8
        $region40: #{tpu_custom_call.1} parent=35 // pred_fallthru
          _
      $region36: #{tpu_custom_call.1} parent=5 // pred_fallthru
        _
      %p2862 = scmp.le.s32.totalorder 2, %s13
      // Predicated region
      $region41: #{tpu_custom_call.1} parent=5 // pred_check
        %p2863 = pneg %p2862
      $region42: #{tpu_custom_call.1} parent=5 // pred_check_branch
        %2865 = sbr.rel (%p2863) target = $region44
      $region43: #{tpu_custom_call.1} parent=5 // pred_region
        %s2866 = ssub.s32 %s13, 2
        // Predicated region
        $region45: #{tpu_custom_call.1} parent=43 // pred_check
          %p2867 = pneg %p131
        $region46: #{tpu_custom_call.1} parent=43 // pred_check_branch
          %2869 = sbr.rel (%p2867) target = $region48
        $region47: #{tpu_custom_call.1} parent=43 // pred_region
          %s2870 = sand.u32 %s116, 1
          %s2871 = scalar_lea.sflag [#allocation3], %s2870
          %s2872 = sand.u32 %s116, 1
          %s2873 = smul.addr %s2872, 128
          %s2874 = scalar_lea.vmem [#allocation2], %s2873
          %2875 = dma.done %s2871, 2048
        $region48: #{tpu_custom_call.1} parent=43 // pred_fallthru
          _
      $region44: #{tpu_custom_call.1} parent=5 // pred_fallthru
        _
    $region6: #{tpu_custom_call.1} parent=1 // loop_footer
      %s17 = sadd.s32 1, %s13
    $region7: #{tpu_custom_call.1} parent=1 // loop_footer_branch
      %12 = sbr.rel target = $region3
    $region8: #{tpu_custom_call.1} parent=1 // loop_exit
      _
    %2876 = vsyncpa [#allocation3], 1
    %s2877 = scalar_lea.sflag [#allocation3], 1
    %2878 = vsyncpa %s2877, 1

</llo_original>
